<compile_context>
chip_gen: v5e
topology: v5e:2x2
jax: 0.10.0
libtpu: 0.0.40
codegen_flags: <defaults>
</compile_context>

<pallas_src>
import functools

import jax
import jax.numpy as jnp
from jax import lax
from jax.experimental import pallas as pl
from jax.experimental.pallas import tpu as pltpu


def _critic_kernel(xa_ref, w_in_ref, w_hh_ref, w_l2_ref, w_l3_ref, b_ref,
                   q_ref, h_sc, c_sc, act_sc, hseq_sc, *, Tc, Bp, H):
    """One time-chunk of the fused Q1+Q2 forward of lstmCritic.

    Row order inside a chunk is time-major: row = t*Bp + b.
    Fused gate columns (width 8H): [i1 i2 | f1 f2 | o1 o2 | g1 g2].
    Fused hidden/cell/head layout (width 2H): [net1 | net2].
    act_sc columns: [gates-preact (8H) | qa (2H)].
    """
    bf16 = jnp.bfloat16

    # Zero the persistent recurrent state at the first chunk (hc=None in torch).
    @pl.when(pl.program_id(0) == 0)
    def _():
        h_sc[...] = jnp.zeros_like(h_sc)
        c_sc[...] = jnp.zeros_like(c_sc)

    # Hoisted input projection for the whole chunk, both nets, gate bias and
    # action projection folded in:  [x | a | 1] @ [[W_ih, 0], [0, W_ax], [b_g, b_ax]]
    act_sc[...] = jnp.dot(xa_ref[...].astype(bf16), w_in_ref[...],
                          preferred_element_type=jnp.float32)

    def step(t, carry):
        h_prev, c_prev = carry                       # SSA carry, no VMEM round-trip
        row = pl.multiple_of(t * Bp, Bp)
        gates = act_sc[pl.ds(row, Bp), :8 * H] + jnp.dot(
            h_prev.astype(bf16), w_hh_ref[...],
            preferred_element_type=jnp.float32)      # (Bp, 8H)
        # Full-width EUP pushes; avoid the non-128-aligned pre-slice at 6H.
        s = jax.nn.sigmoid(gates)                    # covers i/f/o of both nets
        g = jnp.tanh(gates[:, 4 * H:])               # aligned second half (H=32 -> lane 128)
        i_g = s[:, 0:2 * H]
        f_g = s[:, 2 * H:4 * H]
        o_g = s[:, 4 * H:6 * H]
        g_g = g[:, 2 * H:]
        c_new = f_g * c_prev + i_g * g_g
        h_new = o_g * jnp.tanh(c_new)
        # Contiguous slab store, not read until after the loop (off critical path).
        hseq_sc[pl.ds(row, Bp), :] = h_new
        return (h_new, c_new)

    h_fin, c_fin = lax.fori_loop(0, Tc, step, (h_sc[...], c_sc[...]), unroll=True)
    h_sc[...] = h_fin                                # persist across chunks
    c_sc[...] = c_fin

    # ---- fused MLP heads for this chunk ------------------------------------
    hs = hseq_sc[...]                                # (Tc*Bp, 2H)
    qa = act_sc[:, 8 * H:]                           # (Tc*Bp, 2H)
    q1_col = lax.broadcasted_iota(jnp.int32, (1, 2 * H), 1) < H   # (1, 2H) lane mask
    # Q1 (cols < H): relu(lstm_out + q1ax(a));  Q2: relu(lstm_out) + relu(q2ax(a))
    z = jnp.where(q1_col, jax.nn.relu(hs + qa), jax.nn.relu(hs) + jax.nn.relu(qa))
    z2 = jax.nn.relu(
        jnp.dot(z.astype(bf16), w_l2_ref[...],
                preferred_element_type=jnp.float32) + b_ref[0:1, 0:2 * H])
    q_ref[...] = jnp.dot(z2.astype(bf16), w_l3_ref[...],
                         preferred_element_type=jnp.float32) + b_ref[1:2, :]


def _run(xa, kp, *, T, Tc, Bp, H):
    NT = T // Tc
    Dxa = xa.shape[1]
    kernel = functools.partial(_critic_kernel, Tc=Tc, Bp=Bp, H=H)

    # Rough VMEM budget: per-chunk blocks (double-buffered) + weights + scratch.
    est = (2 * (Tc * Bp * Dxa * 4 + Tc * Bp * 128 * 4)
           + 2 * (kp["w_in"].size + kp["w_hh"].size
                  + kp["w_l2"].size + kp["w_l3"].size)      # bf16 weights
           + 4 * kp["b_l23"].size
           + Tc * Bp * (10 * H + 2 * H) * 4                  # act + hseq scratch
           + 4 * Bp * 2 * H * 4)                             # h/c scratch
    vmem_limit = int(max(2 * est, 32 * 1024 * 1024))

    grid_spec = pltpu.PrefetchScalarGridSpec(
        num_scalar_prefetch=0,
        grid=(NT,),
        in_specs=[
            pl.BlockSpec((Tc * Bp, Dxa), lambda c: (c, 0)),          # [x|a|1] chunk
            pl.BlockSpec(kp["w_in"].shape, lambda c: (0, 0)),        # fused input proj
            pl.BlockSpec(kp["w_hh"].shape, lambda c: (0, 0)),        # recurrent weights
            pl.BlockSpec(kp["w_l2"].shape, lambda c: (0, 0)),
            pl.BlockSpec(kp["w_l3"].shape, lambda c: (0, 0)),
            pl.BlockSpec(kp["b_l23"].shape, lambda c: (0, 0)),
        ],
        out_specs=pl.BlockSpec((Tc * Bp, 128), lambda c: (c, 0)),    # lane-dense output
        scratch_shapes=[
            pltpu.VMEM((Bp, 2 * H), jnp.float32),         # h (persists across chunks)
            pltpu.VMEM((Bp, 2 * H), jnp.float32),         # c
            pltpu.VMEM((Tc * Bp, 10 * H), jnp.float32),   # [gate preacts | qa] for chunk
            pltpu.VMEM((Tc * Bp, 2 * H), jnp.float32),    # hidden sequence for chunk
        ],
    )
    return pl.pallas_call(
        kernel,
        out_shape=jax.ShapeDtypeStruct((T * Bp, 128), jnp.float32),
        grid_spec=grid_spec,
        compiler_params=pltpu.CompilerParams(
            dimension_semantics=("arbitrary",),           # chunks carry h/c sequentially
            vmem_limit_bytes=vmem_limit),
    )(xa, kp["w_in"], kp["w_hh"], kp["w_l2"], kp["w_l3"], kp["b_l23"])


# ---------------- parameter construction (deterministic, PyTorch-style shapes) ----

def _make_q_params(key, din, a_dim, h):
    ks = jax.random.split(key, 10)

    def u(k, shape, fan_in):
        bound = 1.0 / jnp.sqrt(jnp.float32(fan_in))
        return jax.random.uniform(k, shape, jnp.float32, -bound, bound)

    return {
        # nn.LSTM(input_size=din, hidden_size=h, num_layers=1)
        "w_ih": u(ks[0], (4 * h, din), h),
        "w_hh": u(ks[1], (4 * h, h), h),
        "b_ih": u(ks[2], (4 * h,), h),
        "b_hh": u(ks[3], (4 * h,), h),
        # nn.Linear(action_dim, h)
        "w_ax": u(ks[4], (h, a_dim), a_dim),
        "b_ax": u(ks[5], (h,), a_dim),
        # nn.Linear(h, h)
        "w_l2": u(ks[6], (h, h), h),
        "b_l2": u(ks[7], (h,), h),
        # nn.Linear(h, 1)
        "w_l3": u(ks[8], (1, h), h),
        "b_l3": u(ks[9], (1,), h),
    }


def _fuse_params(p1, p2):
    """Pack both Q-networks' parameters into the fused (bf16) kernel layout."""
    H = p1["w_hh"].shape[1]
    din = p1["w_ih"].shape[1]
    a_dim = p1["w_ax"].shape[1]
    f32 = jnp.float32

    def gate_chunks(w):
        # PyTorch LSTM row order: [i; f; g; o], each (H, in_dim)
        return w[0:H], w[H:2 * H], w[2 * H:3 * H], w[3 * H:4 * H]

    # fused input weights (din, 8H), columns [i1 i2 f1 f2 o1 o2 g1 g2]
    i1, f1, g1, o1 = gate_chunks(p1["w_ih"])
    i2, f2, g2, o2 = gate_chunks(p2["w_ih"])
    w_ih = jnp.concatenate([i1, i2, f1, f2, o1, o2, g1, g2], axis=0).T

    # fused recurrent weights (2H, 8H): block structure per network
    ri1, rf1, rg1, ro1 = gate_chunks(p1["w_hh"])
    ri2, rf2, rg2, ro2 = gate_chunks(p2["w_hh"])
    zH = jnp.zeros((H, H), f32)
    w_hh = jnp.concatenate([
        jnp.concatenate([ri1.T, zH, rf1.T, zH, ro1.T, zH, rg1.T, zH], axis=1),
        jnp.concatenate([zH, ri2.T, zH, rf2.T, zH, ro2.T, zH, rg2.T], axis=1)],
        axis=0)

    # fused gate bias (1, 8H), same column order
    def bias_chunks(p):
        b = p["b_ih"] + p["b_hh"]
        return b[0:H], b[H:2 * H], b[2 * H:3 * H], b[3 * H:4 * H]
    bi1, bf1, bg1, bo1 = bias_chunks(p1)
    bi2, bf2, bg2, bo2 = bias_chunks(p2)
    b_g = jnp.concatenate([bi1, bi2, bf1, bf2, bo1, bo2, bg1, bg2]).reshape(1, -1)

    # fused action projection (A, 2H) / (1, 2H)
    w_ax = jnp.concatenate([p1["w_ax"].T, p2["w_ax"].T], axis=1)
    b_ax = jnp.concatenate([p1["b_ax"], p2["b_ax"]]).reshape(1, -1)

    # single input projection:  [x | a | 1] @ W_in -> [gate preacts (8H) | qa (2H)]
    w_in = jnp.concatenate([
        jnp.concatenate([w_ih, jnp.zeros((din, 2 * H), f32)], axis=1),
        jnp.concatenate([jnp.zeros((a_dim, 8 * H), f32), w_ax], axis=1),
        jnp.concatenate([b_g, b_ax], axis=1),
    ], axis=0)                                                   # (din+A+1, 10H)

    # fused hidden->hidden layer (block-diagonal (2H, 2H))
    w_l2 = jnp.concatenate([
        jnp.concatenate([p1["w_l2"].T, zH], axis=1),
        jnp.concatenate([zH, p2["w_l2"].T], axis=1)], axis=0)

    # fused scalar heads into a lane-dense (2H, 128) projection (cols 2: zero)
    w_l3 = jnp.zeros((2 * H, 128), f32)
    w_l3 = w_l3.at[0:H, 0].set(p1["w_l3"][0])
    w_l3 = w_l3.at[H:2 * H, 1].set(p2["w_l3"][0])

    # packed l2/l3 biases: row0 = [b1_l2 | b2_l2 | 0...], row1 = [b1_l3, b2_l3, 0...]
    b_l23 = jnp.zeros((2, 128), f32)
    b_l23 = b_l23.at[0, 0:H].set(p1["b_l2"])
    b_l23 = b_l23.at[0, H:2 * H].set(p2["b_l2"])
    b_l23 = b_l23.at[1, 0].set(p1["b_l3"][0])
    b_l23 = b_l23.at[1, 1].set(p2["b_l3"][0])

    bf16 = jnp.bfloat16
    return {"w_in": w_in.astype(bf16), "w_hh": w_hh.astype(bf16),
            "w_l2": w_l2.astype(bf16), "w_l3": w_l3.astype(bf16),
            "b_l23": b_l23}


def lstm_critic_forward(x, a, p1, p2, *, time_chunk=8):
    """x: (B, T, state_dim+action_dim); a: (B*T, action_dim), row = b*T + t.
    Returns (q1, q2), each (B*T, 1), matching the PyTorch forward (hc=None)."""
    B, T, Din = x.shape
    A = a.shape[1]
    H = p1["w_hh"].shape[1]
    Bp = ((B + 7) // 8) * 8               # pad batch (sublane dim) to multiple of 8
    pad = Bp - B

    Tc = max(1, min(time_chunk, T))       # time-chunk size (must divide T)
    while T % Tc:
        Tc -= 1

    # time-major, batch-padded, [x | a | 1] feature concat, flattened (row = t*Bp+b)
    x_t = jnp.transpose(x, (1, 0, 2))                            # (T, B, Din)
    a_t = jnp.transpose(a.reshape(B, T, A), (1, 0, 2))           # (T, B, A)
    ones = jnp.ones((T, B, 1), jnp.float32)
    xa = jnp.concatenate([x_t, a_t, ones], axis=-1)
    xa = jnp.pad(xa, ((0, 0), (0, pad), (0, 0))).reshape(T * Bp, Din + A + 1)

    kp = _fuse_params(p1, p2)
    q = _run(xa, kp, T=T, Tc=Tc, Bp=Bp, H=H)                     # (T*Bp, 128)

    q = q.reshape(T, Bp, 128)[:, :B, 0:2]                        # drop pad, take q1/q2 lanes
    q = jnp.transpose(q, (1, 0, 2)).reshape(B * T, 2)            # back to b*T+t rows
    return q[:, 0:1], q[:, 1:2]


# ---------------- pure-JAX f32 reference (mirrors the PyTorch forward) -----------

def _ref_q(x, a, p, sum_then_relu):
    B, T, _ = x.shape
    H = p["w_hh"].shape[1]
    h = jnp.zeros((B, H), jnp.float32)
    c = jnp.zeros((B, H), jnp.float32)
    outs = []
    for t in range(T):
        gates = x[:, t, :] @ p["w_ih"].T + h @ p["w_hh"].T + p["b_ih"] + p["b_hh"]
        i_g = jax.nn.sigmoid(gates[:, :H])
        f_g = jax.nn.sigmoid(gates[:, H:2 * H])
        g_g = jnp.tanh(gates[:, 2 * H:3 * H])
        o_g = jax.nn.sigmoid(gates[:, 3 * H:])
        c = f_g * c + i_g * g_g
        h = o_g * jnp.tanh(c)
        outs.append(h)
    hs = jnp.stack(outs, axis=1).reshape(B * T, H)
    qa = a @ p["w_ax"].T + p["b_ax"]
    if sum_then_relu:
        z = jax.nn.relu(hs + qa)
    else:
        z = jax.nn.relu(hs) + jax.nn.relu(qa)
    z = jax.nn.relu(z @ p["w_l2"].T + p["b_l2"])
    return z @ p["w_l3"].T + p["b_l3"]


if __name__ == "__main__":
    state_dim, action_dim, hidden_dim = 8, 4, 32
    B, T = 2, 8
    din = state_dim + action_dim

    key = jax.random.PRNGKey(0)
    kx, ka, kp1, kp2 = jax.random.split(key, 4)

    x = jax.random.normal(kx, (B, T, din), jnp.float32)
    a = jax.random.normal(ka, (B * T, action_dim), jnp.float32)

    p1 = _make_q_params(kp1, din, action_dim, hidden_dim)
    p2 = _make_q_params(kp2, din, action_dim, hidden_dim)

    # time_chunk=4 -> 2 grid iterations, exercising the cross-chunk h/c carry.
    q1, q2 = lstm_critic_forward(x, a, p1, p2, time_chunk=4)
    jax.block_until_ready((q1, q2))

    q1_ref = _ref_q(x, a, p1, True)
    q2_ref = _ref_q(x, a, p2, False)
    assert q1.shape == (B * T, 1) and q2.shape == (B * T, 1)
    # bf16 MXU operands (f32 accumulation) vs pure-f32 reference -> loosened tolerance.
    assert jnp.allclose(q1, q1_ref, rtol=3e-2, atol=3e-2), \
        float(jnp.max(jnp.abs(q1 - q1_ref)))
    assert jnp.allclose(q2, q2_ref, rtol=3e-2, atol=3e-2), \
        float(jnp.max(jnp.abs(q2 - q2_ref)))

    print("KERNEL_OK")
</pallas_src>

<mosaic_0001>
module attributes {stable_mosaic.version = 11 : i64} {
  func.func @_critic_kernel(%arg0: i32, %arg1: memref<32x17xf32, #tpu.memory_space<vmem>>, %arg2: memref<17x320xbf16, #tpu.memory_space<vmem>>, %arg3: memref<64x256xbf16, #tpu.memory_space<vmem>>, %arg4: memref<64x64xbf16, #tpu.memory_space<vmem>>, %arg5: memref<64x128xbf16, #tpu.memory_space<vmem>>, %arg6: memref<2x128xf32, #tpu.memory_space<vmem>>, %arg7: memref<32x128xf32, #tpu.memory_space<vmem>>, %arg8: memref<8x64xf32, #tpu.memory_space<vmem>>, %arg9: memref<8x64xf32, #tpu.memory_space<vmem>>, %arg10: memref<32x320xf32, #tpu.memory_space<vmem>>, %arg11: memref<32x64xf32, #tpu.memory_space<vmem>>) attributes {dimension_semantics = [#tpu.dimension_semantics<arbitrary>], iteration_bounds = array<i64: 2>, scalar_prefetch = 0 : i64, scratch_operands = 4 : i64, tpu.core_type = #tpu.core_type<tc>, window_params = [{transform_indices = @transform_0, window_bounds = array<i64: 32, 17>}, {pipeline_mode = #tpu.pipeline_mode<synchronous>, transform_indices = @transform_1, window_bounds = array<i64: 17, 320>}, {pipeline_mode = #tpu.pipeline_mode<synchronous>, transform_indices = @transform_2, window_bounds = array<i64: 64, 256>}, {pipeline_mode = #tpu.pipeline_mode<synchronous>, transform_indices = @transform_3, window_bounds = array<i64: 64, 64>}, {pipeline_mode = #tpu.pipeline_mode<synchronous>, transform_indices = @transform_4, window_bounds = array<i64: 64, 128>}, {pipeline_mode = #tpu.pipeline_mode<synchronous>, transform_indices = @transform_5, window_bounds = array<i64: 2, 128>}, {transform_indices = @transform_6, window_bounds = array<i64: 32, 128>}]} {
    %c0_i32 = arith.constant 0 : i32
    %0 = arith.cmpi eq, %arg0, %c0_i32 : i32
    %1 = arith.extui %0 : i1 to i32
    %c0_i32_0 = arith.constant 0 : i32
    %2 = arith.cmpi ne, %1, %c0_i32_0 : i32
    scf.if %2 {
      %cst_60 = arith.constant 0.000000e+00 : f32
      %147 = vector.broadcast %cst_60 : f32 to vector<8x64xf32>
      %c0_61 = arith.constant 0 : index
      %c0_62 = arith.constant 0 : index
      %148 = vector.load %arg8[%c0_61, %c0_62] : memref<8x64xf32, #tpu.memory_space<vmem>>, vector<8x64xf32>
      tpu.vector_store %arg8[%c0_61, %c0_62], %147 {strides = array<i32>} : memref<8x64xf32, #tpu.memory_space<vmem>>, vector<8x64xf32>,
      %cst_63 = arith.constant 0.000000e+00 : f32
      %149 = vector.broadcast %cst_63 : f32 to vector<8x64xf32>
      %c0_64 = arith.constant 0 : index
      %c0_65 = arith.constant 0 : index
      %150 = vector.load %arg9[%c0_64, %c0_65] : memref<8x64xf32, #tpu.memory_space<vmem>>, vector<8x64xf32>
      tpu.vector_store %arg9[%c0_64, %c0_65], %149 {strides = array<i32>} : memref<8x64xf32, #tpu.memory_space<vmem>>, vector<8x64xf32>,
    } else {
    }
    %c0 = arith.constant 0 : index
    %c0_1 = arith.constant 0 : index
    %3 = vector.load %arg1[%c0, %c0_1] : memref<32x17xf32, #tpu.memory_space<vmem>>, vector<32x17xf32>
    %4 = arith.truncf %3 : vector<32x17xf32> to vector<32x17xbf16>
    %c0_2 = arith.constant 0 : index
    %c0_3 = arith.constant 0 : index
    %5 = vector.load %arg2[%c0_2, %c0_3] : memref<17x320xbf16, #tpu.memory_space<vmem>>, vector<17x320xbf16>
    %cst = arith.constant dense<0.000000e+00> : vector<32x320xf32>
    %6 = tpu.matmul %4, %5, %cst {dimension_numbers = #tpu.dot_dimension_numbers<[1], [0], [0], [1], [0, 0, 1, 1], [], []>} : vector<32x17xbf16>, vector<17x320xbf16>, vector<32x320xf32> -> vector<32x320xf32>
    %c0_4 = arith.constant 0 : index
    %c0_5 = arith.constant 0 : index
    %7 = vector.load %arg10[%c0_4, %c0_5] : memref<32x320xf32, #tpu.memory_space<vmem>>, vector<32x320xf32>
    tpu.vector_store %arg10[%c0_4, %c0_5], %6 {strides = array<i32>} : memref<32x320xf32, #tpu.memory_space<vmem>>, vector<32x320xf32>,
    %c0_6 = arith.constant 0 : index
    %c0_7 = arith.constant 0 : index
    %8 = vector.load %arg8[%c0_6, %c0_7] : memref<8x64xf32, #tpu.memory_space<vmem>>, vector<8x64xf32>
    %c0_8 = arith.constant 0 : index
    %c0_9 = arith.constant 0 : index
    %9 = vector.load %arg9[%c0_8, %c0_9] : memref<8x64xf32, #tpu.memory_space<vmem>>, vector<8x64xf32>
    %c0_i32_10 = arith.constant 0 : i32
    %c8_i32 = arith.constant 8 : i32
    %10 = arith.muli %c0_i32_10, %c8_i32 : i32
    %11 = tpu.assume_multiple %10, 8 : i32
    %12 = arith.index_cast %11 : i32 to index
    %c0_11 = arith.constant 0 : index
    %13 = vector.load %arg10[%12, %c0_11] : memref<32x320xf32, #tpu.memory_space<vmem>>, vector<8x256xf32>
    %14 = arith.truncf %8 : vector<8x64xf32> to vector<8x64xbf16>
    %c0_12 = arith.constant 0 : index
    %c0_13 = arith.constant 0 : index
    %15 = vector.load %arg3[%c0_12, %c0_13] : memref<64x256xbf16, #tpu.memory_space<vmem>>, vector<64x256xbf16>
    %cst_14 = arith.constant dense<0.000000e+00> : vector<8x256xf32>
    %16 = tpu.matmul %14, %15, %cst_14 {dimension_numbers = #tpu.dot_dimension_numbers<[1], [0], [0], [1], [0, 0, 1, 1], [], []>} : vector<8x64xbf16>, vector<64x256xbf16>, vector<8x256xf32> -> vector<8x256xf32>
    %17 = arith.addf %13, %16 : vector<8x256xf32>
    %18 = arith.negf %17 : vector<8x256xf32>
    %19 = math.exp %18 : vector<8x256xf32>
    %cst_15 = arith.constant 1.000000e+00 : f32
    %20 = vector.broadcast %cst_15 : f32 to vector<8x256xf32>
    %21 = arith.addf %20, %19 : vector<8x256xf32>
    %22 = arith.divf %20, %21 : vector<8x256xf32>
    %23 = vector.extract_strided_slice %17 {offsets = [0, 128], sizes = [8, 128], strides = [1, 1]} : vector<8x256xf32> to vector<8x128xf32>
    %24 = math.tanh %23 : vector<8x128xf32>
    %25 = vector.extract_strided_slice %22 {offsets = [0, 0], sizes = [8, 64], strides = [1, 1]} : vector<8x256xf32> to vector<8x64xf32>
    %26 = vector.extract_strided_slice %22 {offsets = [0, 64], sizes = [8, 64], strides = [1, 1]} : vector<8x256xf32> to vector<8x64xf32>
    %27 = vector.extract_strided_slice %22 {offsets = [0, 128], sizes = [8, 64], strides = [1, 1]} : vector<8x256xf32> to vector<8x64xf32>
    %28 = vector.extract_strided_slice %24 {offsets = [0, 64], sizes = [8, 64], strides = [1, 1]} : vector<8x128xf32> to vector<8x64xf32>
    %29 = arith.mulf %26, %9 : vector<8x64xf32>
    %30 = arith.mulf %25, %28 : vector<8x64xf32>
    %31 = arith.addf %29, %30 : vector<8x64xf32>
    %32 = math.tanh %31 : vector<8x64xf32>
    %33 = arith.mulf %27, %32 : vector<8x64xf32>
    %34 = arith.index_cast %11 : i32 to index
    %c0_16 = arith.constant 0 : index
    %35 = vector.load %arg11[%34, %c0_16] : memref<32x64xf32, #tpu.memory_space<vmem>>, vector<8x64xf32>
    tpu.vector_store %arg11[%34, %c0_16], %33 {strides = array<i32>} : memref<32x64xf32, #tpu.memory_space<vmem>>, vector<8x64xf32>,
    %c1_i32 = arith.constant 1 : i32
    %c8_i32_17 = arith.constant 8 : i32
    %36 = arith.muli %c1_i32, %c8_i32_17 : i32
    %37 = tpu.assume_multiple %36, 8 : i32
    %38 = arith.index_cast %37 : i32 to index
    %c0_18 = arith.constant 0 : index
    %39 = vector.load %arg10[%38, %c0_18] : memref<32x320xf32, #tpu.memory_space<vmem>>, vector<8x256xf32>
    %40 = arith.truncf %33 : vector<8x64xf32> to vector<8x64xbf16>
    %c0_19 = arith.constant 0 : index
    %c0_20 = arith.constant 0 : index
    %41 = vector.load %arg3[%c0_19, %c0_20] : memref<64x256xbf16, #tpu.memory_space<vmem>>, vector<64x256xbf16>
    %cst_21 = arith.constant dense<0.000000e+00> : vector<8x256xf32>
    %42 = tpu.matmul %40, %41, %cst_21 {dimension_numbers = #tpu.dot_dimension_numbers<[1], [0], [0], [1], [0, 0, 1, 1], [], []>} : vector<8x64xbf16>, vector<64x256xbf16>, vector<8x256xf32> -> vector<8x256xf32>
    %43 = arith.addf %39, %42 : vector<8x256xf32>
    %44 = arith.negf %43 : vector<8x256xf32>
    %45 = math.exp %44 : vector<8x256xf32>
    %cst_22 = arith.constant 1.000000e+00 : f32
    %46 = vector.broadcast %cst_22 : f32 to vector<8x256xf32>
    %47 = arith.addf %46, %45 : vector<8x256xf32>
    %48 = arith.divf %46, %47 : vector<8x256xf32>
    %49 = vector.extract_strided_slice %43 {offsets = [0, 128], sizes = [8, 128], strides = [1, 1]} : vector<8x256xf32> to vector<8x128xf32>
    %50 = math.tanh %49 : vector<8x128xf32>
    %51 = vector.extract_strided_slice %48 {offsets = [0, 0], sizes = [8, 64], strides = [1, 1]} : vector<8x256xf32> to vector<8x64xf32>
    %52 = vector.extract_strided_slice %48 {offsets = [0, 64], sizes = [8, 64], strides = [1, 1]} : vector<8x256xf32> to vector<8x64xf32>
    %53 = vector.extract_strided_slice %48 {offsets = [0, 128], sizes = [8, 64], strides = [1, 1]} : vector<8x256xf32> to vector<8x64xf32>
    %54 = vector.extract_strided_slice %50 {offsets = [0, 64], sizes = [8, 64], strides = [1, 1]} : vector<8x128xf32> to vector<8x64xf32>
    %55 = arith.mulf %52, %31 : vector<8x64xf32>
    %56 = arith.mulf %51, %54 : vector<8x64xf32>
    %57 = arith.addf %55, %56 : vector<8x64xf32>
    %58 = math.tanh %57 : vector<8x64xf32>
    %59 = arith.mulf %53, %58 : vector<8x64xf32>
    %60 = arith.index_cast %37 : i32 to index
    %c0_23 = arith.constant 0 : index
    %61 = vector.load %arg11[%60, %c0_23] : memref<32x64xf32, #tpu.memory_space<vmem>>, vector<8x64xf32>
    tpu.vector_store %arg11[%60, %c0_23], %59 {strides = array<i32>} : memref<32x64xf32, #tpu.memory_space<vmem>>, vector<8x64xf32>,
    %c2_i32 = arith.constant 2 : i32
    %c8_i32_24 = arith.constant 8 : i32
    %62 = arith.muli %c2_i32, %c8_i32_24 : i32
    %63 = tpu.assume_multiple %62, 8 : i32
    %64 = arith.index_cast %63 : i32 to index
    %c0_25 = arith.constant 0 : index
    %65 = vector.load %arg10[%64, %c0_25] : memref<32x320xf32, #tpu.memory_space<vmem>>, vector<8x256xf32>
    %66 = arith.truncf %59 : vector<8x64xf32> to vector<8x64xbf16>
    %c0_26 = arith.constant 0 : index
    %c0_27 = arith.constant 0 : index
    %67 = vector.load %arg3[%c0_26, %c0_27] : memref<64x256xbf16, #tpu.memory_space<vmem>>, vector<64x256xbf16>
    %cst_28 = arith.constant dense<0.000000e+00> : vector<8x256xf32>
    %68 = tpu.matmul %66, %67, %cst_28 {dimension_numbers = #tpu.dot_dimension_numbers<[1], [0], [0], [1], [0, 0, 1, 1], [], []>} : vector<8x64xbf16>, vector<64x256xbf16>, vector<8x256xf32> -> vector<8x256xf32>
    %69 = arith.addf %65, %68 : vector<8x256xf32>
    %70 = arith.negf %69 : vector<8x256xf32>
    %71 = math.exp %70 : vector<8x256xf32>
    %cst_29 = arith.constant 1.000000e+00 : f32
    %72 = vector.broadcast %cst_29 : f32 to vector<8x256xf32>
    %73 = arith.addf %72, %71 : vector<8x256xf32>
    %74 = arith.divf %72, %73 : vector<8x256xf32>
    %75 = vector.extract_strided_slice %69 {offsets = [0, 128], sizes = [8, 128], strides = [1, 1]} : vector<8x256xf32> to vector<8x128xf32>
    %76 = math.tanh %75 : vector<8x128xf32>
    %77 = vector.extract_strided_slice %74 {offsets = [0, 0], sizes = [8, 64], strides = [1, 1]} : vector<8x256xf32> to vector<8x64xf32>
    %78 = vector.extract_strided_slice %74 {offsets = [0, 64], sizes = [8, 64], strides = [1, 1]} : vector<8x256xf32> to vector<8x64xf32>
    %79 = vector.extract_strided_slice %74 {offsets = [0, 128], sizes = [8, 64], strides = [1, 1]} : vector<8x256xf32> to vector<8x64xf32>
    %80 = vector.extract_strided_slice %76 {offsets = [0, 64], sizes = [8, 64], strides = [1, 1]} : vector<8x128xf32> to vector<8x64xf32>
    %81 = arith.mulf %78, %57 : vector<8x64xf32>
    %82 = arith.mulf %77, %80 : vector<8x64xf32>
    %83 = arith.addf %81, %82 : vector<8x64xf32>
    %84 = math.tanh %83 : vector<8x64xf32>
    %85 = arith.mulf %79, %84 : vector<8x64xf32>
    %86 = arith.index_cast %63 : i32 to index
    %c0_30 = arith.constant 0 : index
    %87 = vector.load %arg11[%86, %c0_30] : memref<32x64xf32, #tpu.memory_space<vmem>>, vector<8x64xf32>
    tpu.vector_store %arg11[%86, %c0_30], %85 {strides = array<i32>} : memref<32x64xf32, #tpu.memory_space<vmem>>, vector<8x64xf32>,
    %c3_i32 = arith.constant 3 : i32
    %c8_i32_31 = arith.constant 8 : i32
    %88 = arith.muli %c3_i32, %c8_i32_31 : i32
    %89 = tpu.assume_multiple %88, 8 : i32
    %90 = arith.index_cast %89 : i32 to index
    %c0_32 = arith.constant 0 : index
    %91 = vector.load %arg10[%90, %c0_32] : memref<32x320xf32, #tpu.memory_space<vmem>>, vector<8x256xf32>
    %92 = arith.truncf %85 : vector<8x64xf32> to vector<8x64xbf16>
    %c0_33 = arith.constant 0 : index
    %c0_34 = arith.constant 0 : index
    %93 = vector.load %arg3[%c0_33, %c0_34] : memref<64x256xbf16, #tpu.memory_space<vmem>>, vector<64x256xbf16>
    %cst_35 = arith.constant dense<0.000000e+00> : vector<8x256xf32>
    %94 = tpu.matmul %92, %93, %cst_35 {dimension_numbers = #tpu.dot_dimension_numbers<[1], [0], [0], [1], [0, 0, 1, 1], [], []>} : vector<8x64xbf16>, vector<64x256xbf16>, vector<8x256xf32> -> vector<8x256xf32>
    %95 = arith.addf %91, %94 : vector<8x256xf32>
    %96 = arith.negf %95 : vector<8x256xf32>
    %97 = math.exp %96 : vector<8x256xf32>
    %cst_36 = arith.constant 1.000000e+00 : f32
    %98 = vector.broadcast %cst_36 : f32 to vector<8x256xf32>
    %99 = arith.addf %98, %97 : vector<8x256xf32>
    %100 = arith.divf %98, %99 : vector<8x256xf32>
    %101 = vector.extract_strided_slice %95 {offsets = [0, 128], sizes = [8, 128], strides = [1, 1]} : vector<8x256xf32> to vector<8x128xf32>
    %102 = math.tanh %101 : vector<8x128xf32>
    %103 = vector.extract_strided_slice %100 {offsets = [0, 0], sizes = [8, 64], strides = [1, 1]} : vector<8x256xf32> to vector<8x64xf32>
    %104 = vector.extract_strided_slice %100 {offsets = [0, 64], sizes = [8, 64], strides = [1, 1]} : vector<8x256xf32> to vector<8x64xf32>
    %105 = vector.extract_strided_slice %100 {offsets = [0, 128], sizes = [8, 64], strides = [1, 1]} : vector<8x256xf32> to vector<8x64xf32>
    %106 = vector.extract_strided_slice %102 {offsets = [0, 64], sizes = [8, 64], strides = [1, 1]} : vector<8x128xf32> to vector<8x64xf32>
    %107 = arith.mulf %104, %83 : vector<8x64xf32>
    %108 = arith.mulf %103, %106 : vector<8x64xf32>
    %109 = arith.addf %107, %108 : vector<8x64xf32>
    %110 = math.tanh %109 : vector<8x64xf32>
    %111 = arith.mulf %105, %110 : vector<8x64xf32>
    %112 = arith.index_cast %89 : i32 to index
    %c0_37 = arith.constant 0 : index
    %113 = vector.load %arg11[%112, %c0_37] : memref<32x64xf32, #tpu.memory_space<vmem>>, vector<8x64xf32>
    tpu.vector_store %arg11[%112, %c0_37], %111 {strides = array<i32>} : memref<32x64xf32, #tpu.memory_space<vmem>>, vector<8x64xf32>,
    %c4_i32 = arith.constant 4 : i32
    %c0_38 = arith.constant 0 : index
    %c0_39 = arith.constant 0 : index
    %114 = vector.load %arg8[%c0_38, %c0_39] : memref<8x64xf32, #tpu.memory_space<vmem>>, vector<8x64xf32>
    tpu.vector_store %arg8[%c0_38, %c0_39], %111 {strides = array<i32>} : memref<8x64xf32, #tpu.memory_space<vmem>>, vector<8x64xf32>,
    %c0_40 = arith.constant 0 : index
    %c0_41 = arith.constant 0 : index
    %115 = vector.load %arg9[%c0_40, %c0_41] : memref<8x64xf32, #tpu.memory_space<vmem>>, vector<8x64xf32>
    tpu.vector_store %arg9[%c0_40, %c0_41], %109 {strides = array<i32>} : memref<8x64xf32, #tpu.memory_space<vmem>>, vector<8x64xf32>,
    %c0_42 = arith.constant 0 : index
    %c0_43 = arith.constant 0 : index
    %116 = vector.load %arg11[%c0_42, %c0_43] : memref<32x64xf32, #tpu.memory_space<vmem>>, vector<32x64xf32>
    %c0_44 = arith.constant 0 : index
    %c256 = arith.constant 256 : index
    %117 = vector.load %arg10[%c0_44, %c256] : memref<32x320xf32, #tpu.memory_space<vmem>>, vector<32x64xf32>
    %118 = tpu.iota {dimensions = array<i32: 1>} : vector<1x64xi32>
    %c32_i32 = arith.constant 32 : i32
    %119 = vector.broadcast %c32_i32 : i32 to vector<1x64xi32>
    %120 = arith.cmpi slt, %118, %119 : vector<1x64xi32>
    %121 = arith.addf %116, %117 : vector<32x64xf32>
    %cst_45 = arith.constant 0.000000e+00 : f32
    %122 = vector.broadcast %cst_45 : f32 to vector<32x64xf32>
    %123 = arith.maximumf %121, %122 : vector<32x64xf32>
    %cst_46 = arith.constant 0.000000e+00 : f32
    %124 = vector.broadcast %cst_46 : f32 to vector<32x64xf32>
    %125 = arith.maximumf %116, %124 : vector<32x64xf32>
    %cst_47 = arith.constant 0.000000e+00 : f32
    %126 = vector.broadcast %cst_47 : f32 to vector<32x64xf32>
    %127 = arith.maximumf %117, %126 : vector<32x64xf32>
    %128 = arith.addf %125, %127 : vector<32x64xf32>
    %129 = vector.shape_cast %120 : vector<1x64xi1> to vector<1x64xi1>
    %130 = vector.broadcast %129 : vector<1x64xi1> to vector<32x64xi1>
    %131 = arith.select %130, %123, %128 : vector<32x64xi1>, vector<32x64xf32>
    %132 = arith.truncf %131 : vector<32x64xf32> to vector<32x64xbf16>
    %c0_48 = arith.constant 0 : index
    %c0_49 = arith.constant 0 : index
    %133 = vector.load %arg4[%c0_48, %c0_49] : memref<64x64xbf16, #tpu.memory_space<vmem>>, vector<64x64xbf16>
    %cst_50 = arith.constant dense<0.000000e+00> : vector<32x64xf32>
    %134 = tpu.matmul %132, %133, %cst_50 {dimension_numbers = #tpu.dot_dimension_numbers<[1], [0], [0], [1], [0, 0, 1, 1], [], []>} : vector<32x64xbf16>, vector<64x64xbf16>, vector<32x64xf32> -> vector<32x64xf32>
    %c0_51 = arith.constant 0 : index
    %c0_52 = arith.constant 0 : index
    %135 = vector.load %arg6[%c0_51, %c0_52] : memref<2x128xf32, #tpu.memory_space<vmem>>, vector<1x64xf32>
    %136 = vector.broadcast %135 : vector<1x64xf32> to vector<32x64xf32>
    %137 = arith.addf %134, %136 : vector<32x64xf32>
    %cst_53 = arith.constant 0.000000e+00 : f32
    %138 = vector.broadcast %cst_53 : f32 to vector<32x64xf32>
    %139 = arith.maximumf %137, %138 : vector<32x64xf32>
    %140 = arith.truncf %139 : vector<32x64xf32> to vector<32x64xbf16>
    %c0_54 = arith.constant 0 : index
    %c0_55 = arith.constant 0 : index
    %141 = vector.load %arg5[%c0_54, %c0_55] : memref<64x128xbf16, #tpu.memory_space<vmem>>, vector<64x128xbf16>
    %cst_56 = arith.constant dense<0.000000e+00> : vector<32x128xf32>
    %142 = tpu.matmul %140, %141, %cst_56 {dimension_numbers = #tpu.dot_dimension_numbers<[1], [0], [0], [1], [0, 0, 1, 1], [], []>} : vector<32x64xbf16>, vector<64x128xbf16>, vector<32x128xf32> -> vector<32x128xf32>
    %c1 = arith.constant 1 : index
    %c0_57 = arith.constant 0 : index
    %143 = vector.load %arg6[%c1, %c0_57] : memref<2x128xf32, #tpu.memory_space<vmem>>, vector<1x128xf32>
    %144 = vector.broadcast %143 : vector<1x128xf32> to vector<32x128xf32>
    %145 = arith.addf %142, %144 : vector<32x128xf32>
    %c0_58 = arith.constant 0 : index
    %c0_59 = arith.constant 0 : index
    %146 = vector.load %arg7[%c0_58, %c0_59] : memref<32x128xf32, #tpu.memory_space<vmem>>, vector<32x128xf32>
    tpu.vector_store %arg7[%c0_58, %c0_59], %145 {strides = array<i32>} : memref<32x128xf32, #tpu.memory_space<vmem>>, vector<32x128xf32>,
    return
  }
  func.func @transform_0(%arg0: i32) -> (i32, i32) {
    %c0_i32 = arith.constant 0 : i32
    %c0_i32_0 = arith.constant 0 : i32
    return %arg0, %c0_i32 : i32, i32
  }
  func.func @transform_1(%arg0: i32) -> (i32, i32) {
    %c0_i32 = arith.constant 0 : i32
    %c0_i32_0 = arith.constant 0 : i32
    %c0_i32_1 = arith.constant 0 : i32
    return %c0_i32, %c0_i32_0 : i32, i32
  }
  func.func @transform_2(%arg0: i32) -> (i32, i32) {
    %c0_i32 = arith.constant 0 : i32
    %c0_i32_0 = arith.constant 0 : i32
    %c0_i32_1 = arith.constant 0 : i32
    return %c0_i32, %c0_i32_0 : i32, i32
  }
  func.func @transform_3(%arg0: i32) -> (i32, i32) {
    %c0_i32 = arith.constant 0 : i32
    %c0_i32_0 = arith.constant 0 : i32
    %c0_i32_1 = arith.constant 0 : i32
    return %c0_i32, %c0_i32_0 : i32, i32
  }
  func.func @transform_4(%arg0: i32) -> (i32, i32) {
    %c0_i32 = arith.constant 0 : i32
    %c0_i32_0 = arith.constant 0 : i32
    %c0_i32_1 = arith.constant 0 : i32
    return %c0_i32, %c0_i32_0 : i32, i32
  }
  func.func @transform_5(%arg0: i32) -> (i32, i32) {
    %c0_i32 = arith.constant 0 : i32
    %c0_i32_0 = arith.constant 0 : i32
    %c0_i32_1 = arith.constant 0 : i32
    return %c0_i32, %c0_i32_0 : i32, i32
  }
  func.func @transform_6(%arg0: i32) -> (i32, i32) {
    %c0_i32 = arith.constant 0 : i32
    %c0_i32_0 = arith.constant 0 : i32
    return %arg0, %c0_i32 : i32, i32
  }
}

</mosaic_0001>

<llo_original>
// kernel: tpu_custom_call.1
$region0: #{tpu_custom_call.1}
  #allocation0 [shape = 'u32[]', space=smem, size = 0x4, offset = 0x4, fixed_abs, tag = 'smem constant byte address 0x4 - core index']
  #allocation1 [shape = 'u32[72,128]{1,0:T(1,128)}', space=vmem, size = 0x9000, scoped, tag = 'internal scratch']
  #allocation2 [shape = 'f32[8,64]{1,0:T(8,128)}', space=vmem, size = 0x1000, scoped, tag = 'scratch operand']
  #allocation3 [shape = 'f32[8,64]{1,0:T(8,128)}', space=vmem, size = 0x1000, scoped, tag = 'scratch operand']
  #allocation4 [shape = 'f32[32,320]{1,0:T(8,128)}', space=vmem, size = 0xc000, scoped, tag = 'scratch operand']
  #allocation5 [shape = 'f32[32,64]{1,0:T(8,128)}', space=vmem, size = 0x4000, scoped, tag = 'scratch operand']
  %s0 = inlined_call_operand.vmem [shape: f32[64,17], index: 0, kind: input, shape index: {}]
  %s1 = inlined_call_operand.hbm [shape: bf16[17,320], index: 1, kind: input, shape index: {}]
  %s2 = inlined_call_operand.vmem [shape: bf16[64,256], index: 2, kind: input, shape index: {}]
  %s3 = inlined_call_operand.hbm [shape: bf16[64,64], index: 3, kind: input, shape index: {}]
  %s4 = inlined_call_operand.hbm [shape: bf16[64,128], index: 4, kind: input, shape index: {}]
  %s5 = inlined_call_operand.vmem [shape: f32[2,128], index: 5, kind: input, shape index: {}]
  %s6 = inlined_call_operand.hbm [shape: f32[64,128], index: 6, kind: output, shape index: {}]
  %s7 = sld [smem:[#allocation0]]
  $region73: #{tpu_custom_call.1} parent=0
    _
  %s9 = ssub.s32 1, %s7
  %s10 = scalar_select 0, %s9, %s7
  $region1: #{tpu_custom_call.1} parent=0
    #allocation6 [shape = 'u8[18432]{0}', space=vmem, size = 0x4800, scoped, tag = 'input window, operand 1, single buffered']
    #allocation7 [shape = 's32[2]{0}', space=sflag, size = 0x8, scoped, tag = 'scoped memory for tpu_custom_call.1']
    #allocation8 [shape = 's32[2]{0}', space=sflag, size = 0x8, scoped, tag = 'scoped memory for tpu_custom_call.1']
    #allocation9 [shape = 'u8[16384]{0}', space=vmem, size = 0x4000, scoped, tag = 'input window, operand 3, single buffered']
    #allocation10 [shape = 's32[1]{0}', space=sflag, size = 0x4, scoped, tag = 'scoped memory for tpu_custom_call.1']
    #allocation11 [shape = 'u8[16384]{0}', space=vmem, size = 0x4000, scoped, tag = 'input window, operand 4, single buffered']
    #allocation12 [shape = 'u8[32768]{0}', space=vmem, size = 0x8000, scoped, tag = 'output window, operand 0']
    %11 = vsyncpa [#allocation7], 0
    %12 = vsyncpa [#allocation10], 0
    %13 = vsyncpa [#allocation8], 0
    %s14 = scalar_lea.sflag [#allocation8], 1
    %15 = vsyncpa %s14, 0
    loop: start=0, step=1, limit=4
    $region2: #{tpu_custom_call.1} parent=1 // loop_pre_header
      _
    $region3: #{tpu_custom_call.1} parent=1 // loop_header
      %s17 = sphi 0, %s21
      %p18 = scmp.ge.s32.totalorder %s17, 4
      %s27 = sphi 0, %s29
      %s30 = sphi 0, %s27
      %s31 = sphi 0, %s30
      %s47 = sphi 0, %s31
      %s51 = sphi 0, %s51
      %s53 = sphi 0, %s51
      %s54 = sphi 0, %s53
      %s68 = sphi 0, %s54
      %s72 = sphi 0, %s72
      %s74 = sphi 0, %s72
      %s75 = sphi 0, %s74
      %s89 = sphi 0, %s75
      %s93 = sphi 0, %s93
      %s95 = sphi 0, %s93
      %s96 = sphi 0, %s95
      %s110 = sphi 0, %s96
      %s114 = sphi 0, %s114
      %s116 = sphi 0, %s114
      %s117 = sphi 0, %s116
      %s131 = sphi 0, %s117
      %s135 = sphi 0, %s135
      %s137 = sphi 0, %s135
      %s138 = sphi 0, %s137
      %s152 = sphi 0, %s138
      %s158 = sphi 0, %s160
      %s161 = sphi 0, %s158
      %s162 = sphi 0, %s161
      %s178 = sphi 0, %s162
    $region4: #{tpu_custom_call.1} parent=1 // loop_header_branch
      %20 = sbr.rel (%p18) target = $region8
    $region5: #{tpu_custom_call.1} parent=1 // loop_body
      %s22 = ssub.s32 %s17, 1
      %s23 = ssub.s32 %s17, 2
      %s24 = sadd.s32 %s17, 1
      %s25 = ssub.s32 %s17, %s24
      %p26 = scmp.eq.s32.totalorder %s25, 0
      %s28 = sadd.s32 %s27, 1
      %s29 = scalar_select %p26, %s27, %s28
      %p32 = pneg %p26
      %p33 = scmp.eq.s32.totalorder %s17, 1
      %p34 = por %p32, %p33
      %p35 = scmp.ne.s32.totalorder %s27, %s30
      %p36 = scmp.eq.s32.totalorder %s17, 0
      %p37 = por %p35, %p36
      %p38 = scmp.ne.s32.totalorder %s27, %s30
      %p39 = scmp.eq.s32.totalorder %s22, 1
      %p40 = por %p38, %p39
      %p41 = scmp.ne.s32.totalorder %s30, %s31
      %p42 = scmp.eq.s32.totalorder %s22, 0
      %p43 = por %p41, %p42
      %p44 = scmp.ne.s32.totalorder %s30, %s31
      %p45 = scmp.eq.s32.totalorder %s23, 1
      %p46 = por %p44, %p45
      %p48 = scmp.ne.s32.totalorder %s31, %s47
      %p49 = scmp.eq.s32.totalorder %s23, 0
      %p50 = por %p48, %p49
      %s52 = sadd.s32 %s51, 1
      %p55 = scmp.eq.s32.totalorder %s17, 1
      %p56 = scmp.ne.s32.totalorder %s51, %s53
      %p57 = scmp.eq.s32.totalorder %s17, 0
      %p58 = por %p56, %p57
      %p59 = scmp.ne.s32.totalorder %s51, %s53
      %p60 = scmp.eq.s32.totalorder %s22, 1
      %p61 = por %p59, %p60
      %p62 = scmp.ne.s32.totalorder %s53, %s54
      %p63 = scmp.eq.s32.totalorder %s22, 0
      %p64 = por %p62, %p63
      %p65 = scmp.ne.s32.totalorder %s53, %s54
      %p66 = scmp.eq.s32.totalorder %s23, 1
      %p67 = por %p65, %p66
      %p69 = scmp.ne.s32.totalorder %s54, %s68
      %p70 = scmp.eq.s32.totalorder %s23, 0
      %p71 = por %p69, %p70
      %s73 = sadd.s32 %s72, 1
      %p76 = scmp.eq.s32.totalorder %s17, 1
      %p77 = scmp.ne.s32.totalorder %s72, %s74
      %p78 = scmp.eq.s32.totalorder %s17, 0
      %p79 = por %p77, %p78
      %p80 = scmp.ne.s32.totalorder %s72, %s74
      %p81 = scmp.eq.s32.totalorder %s22, 1
      %p82 = por %p80, %p81
      %p83 = scmp.ne.s32.totalorder %s74, %s75
      %p84 = scmp.eq.s32.totalorder %s22, 0
      %p85 = por %p83, %p84
      %p86 = scmp.ne.s32.totalorder %s74, %s75
      %p87 = scmp.eq.s32.totalorder %s23, 1
      %p88 = por %p86, %p87
      %p90 = scmp.ne.s32.totalorder %s75, %s89
      %p91 = scmp.eq.s32.totalorder %s23, 0
      %p92 = por %p90, %p91
      %s94 = sadd.s32 %s93, 1
      %p97 = scmp.eq.s32.totalorder %s17, 1
      %p98 = scmp.ne.s32.totalorder %s93, %s95
      %p99 = scmp.eq.s32.totalorder %s17, 0
      %p100 = por %p98, %p99
      %p101 = scmp.ne.s32.totalorder %s93, %s95
      %p102 = scmp.eq.s32.totalorder %s22, 1
      %p103 = por %p101, %p102
      %p104 = scmp.ne.s32.totalorder %s95, %s96
      %p105 = scmp.eq.s32.totalorder %s22, 0
      %p106 = por %p104, %p105
      %p107 = scmp.ne.s32.totalorder %s95, %s96
      %p108 = scmp.eq.s32.totalorder %s23, 1
      %p109 = por %p107, %p108
      %p111 = scmp.ne.s32.totalorder %s96, %s110
      %p112 = scmp.eq.s32.totalorder %s23, 0
      %p113 = por %p111, %p112
      %s115 = sadd.s32 %s114, 1
      %p118 = scmp.eq.s32.totalorder %s17, 1
      %p119 = scmp.ne.s32.totalorder %s114, %s116
      %p120 = scmp.eq.s32.totalorder %s17, 0
      %p121 = por %p119, %p120
      %p122 = scmp.ne.s32.totalorder %s114, %s116
      %p123 = scmp.eq.s32.totalorder %s22, 1
      %p124 = por %p122, %p123
      %p125 = scmp.ne.s32.totalorder %s116, %s117
      %p126 = scmp.eq.s32.totalorder %s22, 0
      %p127 = por %p125, %p126
      %p128 = scmp.ne.s32.totalorder %s116, %s117
      %p129 = scmp.eq.s32.totalorder %s23, 1
      %p130 = por %p128, %p129
      %p132 = scmp.ne.s32.totalorder %s117, %s131
      %p133 = scmp.eq.s32.totalorder %s23, 0
      %p134 = por %p132, %p133
      %s136 = sadd.s32 %s135, 1
      %p139 = scmp.eq.s32.totalorder %s17, 1
      %p140 = scmp.ne.s32.totalorder %s135, %s137
      %p141 = scmp.eq.s32.totalorder %s17, 0
      %p142 = por %p140, %p141
      %p143 = scmp.ne.s32.totalorder %s135, %s137
      %p144 = scmp.eq.s32.totalorder %s22, 1
      %p145 = por %p143, %p144
      %p146 = scmp.ne.s32.totalorder %s137, %s138
      %p147 = scmp.eq.s32.totalorder %s22, 0
      %p148 = por %p146, %p147
      %p149 = scmp.ne.s32.totalorder %s137, %s138
      %p150 = scmp.eq.s32.totalorder %s23, 1
      %p151 = por %p149, %p150
      %p153 = scmp.ne.s32.totalorder %s138, %s152
      %p154 = scmp.eq.s32.totalorder %s23, 0
      %p155 = por %p153, %p154
      %s156 = ssub.s32 %s17, %s24
      %p157 = scmp.eq.s32.totalorder %s156, 0
      %s159 = sadd.s32 %s158, 1
      %s160 = scalar_select %p157, %s158, %s159
      %p163 = pneg %p157
      %p164 = scmp.eq.s32.totalorder %s17, 1
      %p165 = por %p163, %p164
      %p166 = scmp.ne.s32.totalorder %s158, %s161
      %p167 = scmp.eq.s32.totalorder %s17, 0
      %p168 = por %p166, %p167
      %p169 = scmp.ne.s32.totalorder %s158, %s161
      %p170 = scmp.eq.s32.totalorder %s22, 1
      %p171 = por %p169, %p170
      %p172 = scmp.ne.s32.totalorder %s161, %s162
      %p173 = scmp.eq.s32.totalorder %s22, 0
      %p174 = por %p172, %p173
      %p175 = scmp.ne.s32.totalorder %s161, %s162
      %p176 = scmp.eq.s32.totalorder %s23, 1
      %p177 = por %p175, %p176
      %p179 = scmp.ne.s32.totalorder %s162, %s178
      %p180 = scmp.eq.s32.totalorder %s23, 0
      %p181 = por %p179, %p180
      %p182 = scmp.le.s32.totalorder 1, %s17
      %p183 = scmp.lt.s32.totalorder %s17, 3
      %p184 = pnand %p182, %p183
      %p185 = pneg %p184
      // Predicated region
      $region9: #{tpu_custom_call.1} parent=5 // pred_check
        _
      $region10: #{tpu_custom_call.1} parent=5 // pred_check_branch
        %187 = sbr.rel (%p184) target = $region12
      $region11: #{tpu_custom_call.1} parent=5 // pred_region
        %s188 = ssub.s32 %s17, 1
        // Predicated region
        $region13: #{tpu_custom_call.1} parent=11 // pred_check
          %p189 = pneg %p64
        $region14: #{tpu_custom_call.1} parent=11 // pred_check_branch
          %191 = sbr.rel (%p189) target = $region16
        $region15: #{tpu_custom_call.1} parent=11 // pred_region
          %193 = vsyncadd [#allocation7], 0
          %s194 = sshll.u32 %s1, 4
          %s195 = int_to_ptr.hbm [resolvable:$true] %s194
          %s196 = sshll.u32 [#allocation6], 4
          %s197 = int_to_ptr.vmem [resolvable:$true] %s196
          %202 = dma.hbm_to_vmem [thread:$0]  %s195, 576, %s197, [#allocation7], 192, 192, 12
        $region16: #{tpu_custom_call.1} parent=11 // pred_fallthru
          _
        // Predicated region
        $region17: #{tpu_custom_call.1} parent=11 // pred_check
          %p203 = pneg %p85
        $region18: #{tpu_custom_call.1} parent=11 // pred_check_branch
          %205 = sbr.rel (%p203) target = $region20
        $region19: #{tpu_custom_call.1} parent=11 // pred_region
          _
        $region20: #{tpu_custom_call.1} parent=11 // pred_fallthru
          _
        // Predicated region
        $region21: #{tpu_custom_call.1} parent=11 // pred_check
          %p206 = pneg %p106
        $region22: #{tpu_custom_call.1} parent=11 // pred_check_branch
          %208 = sbr.rel (%p206) target = $region24
        $region23: #{tpu_custom_call.1} parent=11 // pred_region
          %210 = vsyncadd [#allocation10], 0
          %s211 = sshll.u32 %s3, 4
          %s212 = int_to_ptr.hbm [resolvable:$true] %s211
          %s213 = sshll.u32 [#allocation9], 4
          %s214 = int_to_ptr.vmem [resolvable:$true] %s213
          %219 = dma.hbm_to_vmem [thread:$0]  %s212, 512, %s214, [#allocation10], 64, 64, 4
        $region24: #{tpu_custom_call.1} parent=11 // pred_fallthru
          _
        // Predicated region
        $region25: #{tpu_custom_call.1} parent=11 // pred_check
          %p220 = pneg %p127
        $region26: #{tpu_custom_call.1} parent=11 // pred_check_branch
          %222 = sbr.rel (%p220) target = $region28
        $region27: #{tpu_custom_call.1} parent=11 // pred_region
          %224 = vsyncadd [#allocation10], 0
          %s225 = sshll.u32 %s4, 4
          %s226 = int_to_ptr.hbm [resolvable:$true] %s225
          %s227 = sshll.u32 [#allocation11], 4
          %s228 = int_to_ptr.vmem [resolvable:$true] %s227
          %233 = dma.hbm_to_vmem [thread:$0]  %s226, 512, %s228, [#allocation10], 64, 64, 4
        $region28: #{tpu_custom_call.1} parent=11 // pred_fallthru
          _
        // Predicated region
        $region29: #{tpu_custom_call.1} parent=11 // pred_check
          %p234 = pneg %p148
        $region30: #{tpu_custom_call.1} parent=11 // pred_check_branch
          %236 = sbr.rel (%p234) target = $region32
        $region31: #{tpu_custom_call.1} parent=11 // pred_region
          _
        $region32: #{tpu_custom_call.1} parent=11 // pred_fallthru
          _
      $region12: #{tpu_custom_call.1} parent=5 // pred_fallthru
        _
      %p237 = scmp.lt.s32.totalorder %s17, 2
      // Predicated region
      $region33: #{tpu_custom_call.1} parent=5 // pred_check
        %p238 = pneg %p237
      $region34: #{tpu_custom_call.1} parent=5 // pred_check_branch
        %240 = sbr.rel (%p238) target = $region36
      $region35: #{tpu_custom_call.1} parent=5 // pred_region
        // Predicated region
        $region37: #{tpu_custom_call.1} parent=35 // pred_check
          %p241 = pneg %p37
        $region38: #{tpu_custom_call.1} parent=35 // pred_check_branch
          %243 = sbr.rel (%p241) target = $region40
        $region39: #{tpu_custom_call.1} parent=35 // pred_region
          %s244 = smul.u32 4, %s17
          %p245 = scmp.lt.s32.totalorder %s244, 7
          %s246 = scalar_select %p245, %s244, 7
          %s247 = smul.addr %s246, 8
          %s248 = scalar_lea.vmem %s0, %s247
          %s249 = smul.u32 4, %s17
        $region40: #{tpu_custom_call.1} parent=35 // pred_fallthru
          _
      $region36: #{tpu_custom_call.1} parent=5 // pred_fallthru
        _
      %p250 = scmp.le.s32.totalorder 1, %s17
      %p251 = scmp.lt.s32.totalorder %s17, 3
      %p252 = pnand %p250, %p251
      %p253 = pneg %p252
      // Predicated region
      $region41: #{tpu_custom_call.1} parent=5 // pred_check
        _
      $region42: #{tpu_custom_call.1} parent=5 // pred_check_branch
        %255 = sbr.rel (%p252) target = $region44
      $region43: #{tpu_custom_call.1} parent=5 // pred_region
        %s256 = ssub.s32 %s17, 1
        // Predicated region
        $region45: #{tpu_custom_call.1} parent=43 // pred_check
          %p257 = pneg %p64
        $region46: #{tpu_custom_call.1} parent=43 // pred_check_branch
          %259 = sbr.rel (%p257) target = $region48
        $region47: #{tpu_custom_call.1} parent=43 // pred_region
          %261 = dma.done [#allocation7], 576
        $region48: #{tpu_custom_call.1} parent=43 // pred_fallthru
          _
        // Predicated region
        $region49: #{tpu_custom_call.1} parent=43 // pred_check
          %p262 = pneg %p106
        $region50: #{tpu_custom_call.1} parent=43 // pred_check_branch
          %264 = sbr.rel (%p262) target = $region52
        $region51: #{tpu_custom_call.1} parent=43 // pred_region
          %266 = dma.done [#allocation10], 512
        $region52: #{tpu_custom_call.1} parent=43 // pred_fallthru
          _
        // Predicated region
        $region53: #{tpu_custom_call.1} parent=43 // pred_check
          %p267 = pneg %p127
        $region54: #{tpu_custom_call.1} parent=43 // pred_check_branch
          %269 = sbr.rel (%p267) target = $region56
        $region55: #{tpu_custom_call.1} parent=43 // pred_region
          %271 = dma.done [#allocation10], 512
        $region56: #{tpu_custom_call.1} parent=43 // pred_fallthru
          _
        %s272 = smul.u32 4, %s22
        %p273 = scmp.lt.s32.totalorder %s272, 7
        %s274 = scalar_select %p273, %s272, 7
        %s275 = smul.addr %s274, 8
        %s276 = scalar_lea.vmem %s0, %s275
        %p277 = pneg %p43
        %p278 = pneg %p40
        %p279 = pneg %p64
        %p280 = pneg %p61
        %p281 = pneg %p85
        %p282 = pneg %p82
        %p283 = pneg %p106
        %p284 = pneg %p103
        %p285 = pneg %p127
        %p286 = pneg %p124
        %p287 = pneg %p148
        %p288 = pneg %p145
        %p289 = pneg %p174
        %p290 = pneg %p171
        %s291 = sand.u32 %s161, 1
        %s292 = scalar_lea.sflag [#allocation8], %s291
        %s293 = sand.u32 %s161, 1
        %s294 = smul.addr %s293, 32
        %s295 = scalar_lea.vmem [#allocation12], %s294
        %s296 = smul.u32 4, %s22
        %p297 = scmp.lt.s32.totalorder %s296, 7
        %s298 = scalar_select %p297, %s296, 7
        %s299 = smul.addr %s298, 8
        %s300 = scalar_lea.vmem %s0, %s299
        %s301 = smul.u32 4, %s22
        %s302 = smul.u32 4, %s22
        %p304 = scmp.eq.s32.totalorder %s22, 0
        // Predicated region
        $region57: #{tpu_custom_call.1} parent=43 // pred_check
          %p305 = pneg %p304
        $region58: #{tpu_custom_call.1} parent=43 // pred_check_branch
          %307 = sbr.rel (%p305) target = $region60
        $region59: #{tpu_custom_call.1} parent=43 // pred_region
          %vm308 = vcmask 523264
          %309 = vst.msk [vmem:[#allocation2] sm:$0xff] %vm308, 0.0
          %310 = vst.msk [vmem:[#allocation3] sm:$0xff] %vm308, 0.0
        $region60: #{tpu_custom_call.1} parent=43 // pred_fallthru
          _
        %v311 = vld [vmem:[%s300] sm:$0xff]
        %v312 = vld [vmem:[%s300 + $0x8] sm:$0xff]
        %v313 = vld [vmem:[%s300 + $0x10] sm:$0xff]
        %v314 = vld [vmem:[%s300 + $0x18] sm:$0xff]
        %v315 = vpack.c.bf16 %v312, %v311
        %v316 = vpack.c.bf16 %v314, %v313
        %v317 = vld [vmem:[#allocation6] sm:$0xff]
        %v318 = vld [vmem:[#allocation6 + $0x8] sm:$0xf]
        %v319 = vld [vmem:[#allocation6 + $0xc] sm:$0xff]
        %v320 = vld [vmem:[#allocation6 + $0x14] sm:$0xf]
        %v321 = vld [vmem:[#allocation6 + $0x18] sm:$0x11]
        %v322 = vld [vmem:[#allocation6 + $0x20] sm:$0x1]
        %v329 = vunpack.c.l.b16 %v317
        %v330 = vunpack.c.h.b16 %v317
        %v331 = vunpack.c.l.b16 %v318
        %v332 = vunpack.c.l.b16 %v319
        %v333 = vunpack.c.h.b16 %v319
        %v334 = vunpack.c.l.b16 %v320
        %v335 = vunpack.c.l.b16 %v321
        %v336 = vunpack.c.h.b16 %v321
        %v337 = vunpack.c.l.b16 %v322
        %v338 = vpack.c.b16 %v332, %v329
        %v339 = vpack.c.b16 %v333, %v330
        %v340 = vpack.c.b16 %v334, %v331
        %v341 = vpack.c.b16 %v335, %v335
        %v342 = vpack.c.b16 %v336, %v336
        %v343 = vpack.c.b16 %v337, %v337
        %vm347 = vcmask 138240
        %v349 = vsel %vm347, %v315, 0
        %v352 = vsel %vm347, %v316, 0
        %vm354 = vcmask 1040384
        %v355 = vsel 0, 4294967295, 65535
        %v356 = vsel %vm354, %v355, 0
        %v358 = vand.u32 %v341, %v356
        %v361 = vand.u32 %v342, %v356
        %v364 = vand.u32 %v343, %v356
        %366 = vmatpush.bf16.msra.mxu0 0
        %367 = vmatpush.bf16.msra.mxu0 0
        %368 = vmatpush.bf16.msra.mxu0 0
        %369 = vmatpush.bf16.msra.mxu0 0
        %370 = vmatpush.bf16.msra.mxu0 0
        %371 = vmatpush.bf16.msra.mxu0 0
        %372 = vmatpush.bf16.msra.mxu0 %v358
        %373 = vmatpush.bf16.msra.mxu0 %v338
        %374 = vmatmul.bf16.gmra.mxu0 %v349
        %v375 = vpop.f32.mrf.mxu0
        %v376 = vadd.f32 0.0, %v375
        %v377 = vpop.f32.mrf.mxu0
        %v378 = vadd.f32 0.0, %v377
        %379 = vmatmul.bf16.gmra.mxu0 %v352
        %v380 = vpop.f32.mrf.mxu0
        %v381 = vadd.f32 0.0, %v380
        %v382 = vpop.f32.mrf.mxu0
        %v383 = vadd.f32 0.0, %v382
        %384 = vdwg.mxu0
        %385 = vmatpush.bf16.msra.mxu0 0
        %386 = vmatpush.bf16.msra.mxu0 0
        %387 = vmatpush.bf16.msra.mxu0 0
        %388 = vmatpush.bf16.msra.mxu0 0
        %389 = vmatpush.bf16.msra.mxu0 0
        %390 = vmatpush.bf16.msra.mxu0 0
        %391 = vmatpush.bf16.msra.mxu0 %v361
        %392 = vmatpush.bf16.msra.mxu0 %v339
        %393 = vmatmul.bf16.gmra.mxu0 %v349
        %v394 = vpop.f32.mrf.mxu0
        %v395 = vadd.f32 0.0, %v394
        %v396 = vpop.f32.mrf.mxu0
        %v397 = vadd.f32 0.0, %v396
        %398 = vmatmul.bf16.gmra.mxu0 %v352
        %v399 = vpop.f32.mrf.mxu0
        %v400 = vadd.f32 0.0, %v399
        %v401 = vpop.f32.mrf.mxu0
        %v402 = vadd.f32 0.0, %v401
        %403 = vdwg.mxu0
        %404 = vmatpush.bf16.msra.mxu0 0
        %405 = vmatpush.bf16.msra.mxu0 0
        %406 = vmatpush.bf16.msra.mxu0 0
        %407 = vmatpush.bf16.msra.mxu0 0
        %408 = vmatpush.bf16.msra.mxu0 0
        %409 = vmatpush.bf16.msra.mxu0 0
        %410 = vmatpush.bf16.msra.mxu0 %v364
        %411 = vmatpush.bf16.msra.mxu0 %v340
        %412 = vmatmul.bf16.gmra.mxu0 %v349
        %v413 = vpop.f32.mrf.mxu0
        %v414 = vadd.f32 0.0, %v413
        %v415 = vpop.f32.mrf.mxu0
        %v416 = vadd.f32 0.0, %v415
        %417 = vmatmul.bf16.gmra.mxu0 %v352
        %v418 = vpop.f32.mrf.mxu0
        %v419 = vadd.f32 0.0, %v418
        %v420 = vpop.f32.mrf.mxu0
        %v421 = vadd.f32 0.0, %v420
        %422 = vdwg.mxu0
        %423 = vst [vmem:[#allocation4] sm:$0xff] %v376
        %424 = vst [vmem:[#allocation4 + $0x8] sm:$0xff] %v395
        %vm425 = vcmask 523264
        %426 = vst.msk [vmem:[#allocation4 + $0x10] sm:$0xff] %vm425, %v414
        %427 = vst [vmem:[#allocation4 + $0x18] sm:$0xff] %v378
        %428 = vst [vmem:[#allocation4 + $0x20] sm:$0xff] %v397
        %429 = vst.msk [vmem:[#allocation4 + $0x28] sm:$0xff] %vm425, %v416
        %430 = vst [vmem:[#allocation4 + $0x30] sm:$0xff] %v381
        %431 = vst [vmem:[#allocation4 + $0x38] sm:$0xff] %v400
        %432 = vst.msk [vmem:[#allocation4 + $0x40] sm:$0xff] %vm425, %v419
        %433 = vst [vmem:[#allocation4 + $0x48] sm:$0xff] %v383
        %434 = vst [vmem:[#allocation4 + $0x50] sm:$0xff] %v402
        %435 = vst.msk [vmem:[#allocation4 + $0x58] sm:$0xff] %vm425, %v421
        %v436 = vld [vmem:[#allocation2] sm:$0xff]
        %v437 = vld [vmem:[#allocation3] sm:$0xff]
        %s438 = smul.u32 0, 3
        %s439 = smul.addr %s438, 8
        %s440 = scalar_lea.vmem [#allocation4], %s439
        %v441 = vld [vmem:[%s440] sm:$0xff]
        %v442 = vld [vmem:[%s440 + $0x8] sm:$0xff]
        %v443 = vpack.c.bf16 %v436, %v436
        %v444 = vld [vmem:[%s2] sm:$0xff]
        %v445 = vld [vmem:[%s2 + $0x8] sm:$0xff]
        %v446 = vld [vmem:[%s2 + $0x10] sm:$0xff]
        %v447 = vld [vmem:[%s2 + $0x18] sm:$0xff]
        %v448 = vld [vmem:[%s2 + $0x20] sm:$0xff]
        %v449 = vld [vmem:[%s2 + $0x28] sm:$0xff]
        %v450 = vld [vmem:[%s2 + $0x30] sm:$0xff]
        %v451 = vld [vmem:[%s2 + $0x38] sm:$0xff]
        %v460 = vunpack.c.l.b16 %v444
        %v461 = vunpack.c.h.b16 %v444
        %v462 = vunpack.c.l.b16 %v445
        %v463 = vunpack.c.h.b16 %v445
        %v464 = vunpack.c.l.b16 %v446
        %v465 = vunpack.c.h.b16 %v446
        %v466 = vunpack.c.l.b16 %v447
        %v467 = vunpack.c.h.b16 %v447
        %v468 = vunpack.c.l.b16 %v448
        %v469 = vunpack.c.h.b16 %v448
        %v470 = vunpack.c.l.b16 %v449
        %v471 = vunpack.c.h.b16 %v449
        %v472 = vunpack.c.l.b16 %v450
        %v473 = vunpack.c.h.b16 %v450
        %v474 = vunpack.c.l.b16 %v451
        %v475 = vunpack.c.h.b16 %v451
        %v476 = vpack.c.b16 %v462, %v460
        %v477 = vpack.c.b16 %v463, %v461
        %v478 = vpack.c.b16 %v466, %v464
        %v479 = vpack.c.b16 %v467, %v465
        %v480 = vpack.c.b16 %v470, %v468
        %v481 = vpack.c.b16 %v471, %v469
        %v482 = vpack.c.b16 %v474, %v472
        %v483 = vpack.c.b16 %v475, %v473
        %v493 = vsel %vm425, %v443, 0
        %495 = vmatpush.bf16.msra.mxu0 0
        %496 = vmatpush.bf16.msra.mxu0 0
        %497 = vmatpush.bf16.msra.mxu0 0
        %498 = vmatpush.bf16.msra.mxu0 0
        %499 = vmatpush.bf16.msra.mxu0 %v482
        %500 = vmatpush.bf16.msra.mxu0 %v480
        %501 = vmatpush.bf16.msra.mxu0 %v478
        %502 = vmatpush.bf16.msra.mxu0 %v476
        %503 = vmatmul.bf16.gmra.mxu0 %v493
        %v504 = vpop.f32.mrf.mxu0
        %v505 = vadd.f32 0.0, %v504
        %v506 = vpop.f32.mrf.mxu0
        %507 = vdwg.mxu0
        %508 = vmatpush.bf16.msra.mxu0 0
        %509 = vmatpush.bf16.msra.mxu0 0
        %510 = vmatpush.bf16.msra.mxu0 0
        %511 = vmatpush.bf16.msra.mxu0 0
        %512 = vmatpush.bf16.msra.mxu0 %v483
        %513 = vmatpush.bf16.msra.mxu0 %v481
        %514 = vmatpush.bf16.msra.mxu0 %v479
        %515 = vmatpush.bf16.msra.mxu0 %v477
        %516 = vmatmul.bf16.gmra.mxu0 %v493
        %v517 = vpop.f32.mrf.mxu0
        %v518 = vadd.f32 0.0, %v517
        %v519 = vpop.f32.mrf.mxu0
        %520 = vdwg.mxu0
        %v521 = vadd.f32 %v441, %v505
        %v522 = vadd.f32 %v442, %v518
        %v523 = vxor.u32 %v521, 2147483648
        %v524 = vxor.u32 %v522, 2147483648
        %v525 = vmul.f32 %v523, 1.442695
        %v526 = vpow.pop %v525
        %v527 = vmul.f32 %v524, 1.442695
        %v528 = vpow.pop %v527
        %v529 = vadd.f32 %v526, 1.0
        %v530 = vadd.f32 %v528, 1.0
        %v531 = vrcp.pop %v529
        %v532 = vmul.f32 %v529, %v531
        %v533 = vsub.f32 1.0, %v532
        %v534 = vmul.f32 %v531, %v533
        %v535 = vadd.f32 %v531, %v534
        %vm536 = vweird.f32 %v529
        %vm537 = vweird.f32 %v531
        %vm538 = vmor %vm536, %vm537
        %v539 = vsel %vm538, %v531, %v535
        %v540 = vand.u32 2147483647, %v529
        %vm541 = vcmp.eq.f32.partialorder %v540, 8.507059e+37
        %v542 = vand.u32 %v529, 2147483648
        %v543 = vor.u32 1.1754944e-38, %v542
        %v544 = vsel %vm541, %v543, %v539
        %v545 = vmul.f32 1.0, %v544
        %v546 = vrcp.pop %v530
        %v547 = vmul.f32 %v530, %v546
        %v548 = vsub.f32 1.0, %v547
        %v549 = vmul.f32 %v546, %v548
        %v550 = vadd.f32 %v546, %v549
        %vm551 = vweird.f32 %v530
        %vm552 = vweird.f32 %v546
        %vm553 = vmor %vm551, %vm552
        %v554 = vsel %vm553, %v546, %v550
        %v555 = vand.u32 2147483647, %v530
        %vm556 = vcmp.eq.f32.partialorder %v555, 8.507059e+37
        %v557 = vand.u32 %v530, 2147483648
        %v558 = vor.u32 1.1754944e-38, %v557
        %v559 = vsel %vm556, %v558, %v554
        %v560 = vmul.f32 1.0, %v559
        %v561 = vtanh.pop %v522
        %563 = vrot.lane.b32.xlu0 %v437, 64
        %v564 = vpop.permute.xlu0 %563
        %v566 = vmul.f32 %v545, %v564
        %568 = vrot.lane.b32.xlu0 %v561, 64
        %v569 = vpop.permute.xlu0 %568
        %v571 = vmul.f32 %v545, %v569
        %573 = vrot.lane.b32.xlu0 %v571, 64
        %v574 = vpop.permute.xlu0 %573
        %v576 = vadd.f32 %v566, %v574
        %v577 = vtanh.pop %v576
        %579 = vrot.lane.b32.xlu0 %v577, 64
        %v580 = vpop.permute.xlu0 %579
        %v582 = vmul.f32 %v560, %v580
        %583 = vst.msk [vmem:[#allocation5] sm:$0xff] %vm425, %v582
        %s584 = smul.u32 1, 3
        %s585 = smul.addr %s584, 8
        %s586 = scalar_lea.vmem [#allocation4], %s585
        %v587 = vld [vmem:[%s586] sm:$0xff]
        %v588 = vld [vmem:[%s586 + $0x8] sm:$0xff]
        %v589 = vpack.c.bf16 %v582, %v582
        %v590 = vld [vmem:[%s2] sm:$0xff]
        %v591 = vld [vmem:[%s2 + $0x8] sm:$0xff]
        %v592 = vld [vmem:[%s2 + $0x10] sm:$0xff]
        %v593 = vld [vmem:[%s2 + $0x18] sm:$0xff]
        %v594 = vld [vmem:[%s2 + $0x20] sm:$0xff]
        %v595 = vld [vmem:[%s2 + $0x28] sm:$0xff]
        %v596 = vld [vmem:[%s2 + $0x30] sm:$0xff]
        %v597 = vld [vmem:[%s2 + $0x38] sm:$0xff]
        %v606 = vunpack.c.l.b16 %v590
        %v607 = vunpack.c.h.b16 %v590
        %v608 = vunpack.c.l.b16 %v591
        %v609 = vunpack.c.h.b16 %v591
        %v610 = vunpack.c.l.b16 %v592
        %v611 = vunpack.c.h.b16 %v592
        %v612 = vunpack.c.l.b16 %v593
        %v613 = vunpack.c.h.b16 %v593
        %v614 = vunpack.c.l.b16 %v594
        %v615 = vunpack.c.h.b16 %v594
        %v616 = vunpack.c.l.b16 %v595
        %v617 = vunpack.c.h.b16 %v595
        %v618 = vunpack.c.l.b16 %v596
        %v619 = vunpack.c.h.b16 %v596
        %v620 = vunpack.c.l.b16 %v597
        %v621 = vunpack.c.h.b16 %v597
        %v622 = vpack.c.b16 %v608, %v606
        %v623 = vpack.c.b16 %v609, %v607
        %v624 = vpack.c.b16 %v612, %v610
        %v625 = vpack.c.b16 %v613, %v611
        %v626 = vpack.c.b16 %v616, %v614
        %v627 = vpack.c.b16 %v617, %v615
        %v628 = vpack.c.b16 %v620, %v618
        %v629 = vpack.c.b16 %v621, %v619
        %v639 = vsel %vm425, %v589, 0
        %641 = vmatpush.bf16.msra.mxu0 0
        %642 = vmatpush.bf16.msra.mxu0 0
        %643 = vmatpush.bf16.msra.mxu0 0
        %644 = vmatpush.bf16.msra.mxu0 0
        %645 = vmatpush.bf16.msra.mxu0 %v628
        %646 = vmatpush.bf16.msra.mxu0 %v626
        %647 = vmatpush.bf16.msra.mxu0 %v624
        %648 = vmatpush.bf16.msra.mxu0 %v622
        %649 = vmatmul.bf16.gmra.mxu0 %v639
        %v650 = vpop.f32.mrf.mxu0
        %v651 = vadd.f32 0.0, %v650
        %v652 = vpop.f32.mrf.mxu0
        %653 = vdwg.mxu0
        %654 = vmatpush.bf16.msra.mxu0 0
        %655 = vmatpush.bf16.msra.mxu0 0
        %656 = vmatpush.bf16.msra.mxu0 0
        %657 = vmatpush.bf16.msra.mxu0 0
        %658 = vmatpush.bf16.msra.mxu0 %v629
        %659 = vmatpush.bf16.msra.mxu0 %v627
        %660 = vmatpush.bf16.msra.mxu0 %v625
        %661 = vmatpush.bf16.msra.mxu0 %v623
        %662 = vmatmul.bf16.gmra.mxu0 %v639
        %v663 = vpop.f32.mrf.mxu0
        %v664 = vadd.f32 0.0, %v663
        %v665 = vpop.f32.mrf.mxu0
        %666 = vdwg.mxu0
        %v667 = vadd.f32 %v587, %v651
        %v668 = vadd.f32 %v588, %v664
        %v669 = vxor.u32 %v667, 2147483648
        %v670 = vxor.u32 %v668, 2147483648
        %v671 = vmul.f32 %v669, 1.442695
        %v672 = vpow.pop %v671
        %v673 = vmul.f32 %v670, 1.442695
        %v674 = vpow.pop %v673
        %v675 = vadd.f32 %v672, 1.0
        %v676 = vadd.f32 %v674, 1.0
        %v677 = vrcp.pop %v675
        %v678 = vmul.f32 %v675, %v677
        %v679 = vsub.f32 1.0, %v678
        %v680 = vmul.f32 %v677, %v679
        %v681 = vadd.f32 %v677, %v680
        %vm682 = vweird.f32 %v675
        %vm683 = vweird.f32 %v677
        %vm684 = vmor %vm682, %vm683
        %v685 = vsel %vm684, %v677, %v681
        %v686 = vand.u32 2147483647, %v675
        %vm687 = vcmp.eq.f32.partialorder %v686, 8.507059e+37
        %v688 = vand.u32 %v675, 2147483648
        %v689 = vor.u32 1.1754944e-38, %v688
        %v690 = vsel %vm687, %v689, %v685
        %v691 = vmul.f32 1.0, %v690
        %v692 = vrcp.pop %v676
        %v693 = vmul.f32 %v676, %v692
        %v694 = vsub.f32 1.0, %v693
        %v695 = vmul.f32 %v692, %v694
        %v696 = vadd.f32 %v692, %v695
        %vm697 = vweird.f32 %v676
        %vm698 = vweird.f32 %v692
        %vm699 = vmor %vm697, %vm698
        %v700 = vsel %vm699, %v692, %v696
        %v701 = vand.u32 2147483647, %v676
        %vm702 = vcmp.eq.f32.partialorder %v701, 8.507059e+37
        %v703 = vand.u32 %v676, 2147483648
        %v704 = vor.u32 1.1754944e-38, %v703
        %v705 = vsel %vm702, %v704, %v700
        %v706 = vmul.f32 1.0, %v705
        %v707 = vtanh.pop %v668
        %v708 = vmul.f32 %v691, %v576
        %710 = vrot.lane.b32.xlu0 %v707, 64
        %v711 = vpop.permute.xlu0 %710
        %v713 = vmul.f32 %v691, %v711
        %715 = vrot.lane.b32.xlu0 %v713, 64
        %v716 = vpop.permute.xlu0 %715
        %v718 = vadd.f32 %v708, %v716
        %v719 = vtanh.pop %v718
        %721 = vrot.lane.b32.xlu0 %v719, 64
        %v722 = vpop.permute.xlu0 %721
        %v724 = vmul.f32 %v706, %v722
        %s725 = scalar_lea.vmem [#allocation5], 8
        %726 = vst.msk [vmem:[%s725] sm:$0xff] %vm425, %v724
        %s727 = smul.u32 2, 3
        %s728 = smul.addr %s727, 8
        %s729 = scalar_lea.vmem [#allocation4], %s728
        %v730 = vld [vmem:[%s729] sm:$0xff]
        %v731 = vld [vmem:[%s729 + $0x8] sm:$0xff]
        %v732 = vpack.c.bf16 %v724, %v724
        %v733 = vld [vmem:[%s2] sm:$0xff]
        %v734 = vld [vmem:[%s2 + $0x8] sm:$0xff]
        %v735 = vld [vmem:[%s2 + $0x10] sm:$0xff]
        %v736 = vld [vmem:[%s2 + $0x18] sm:$0xff]
        %v737 = vld [vmem:[%s2 + $0x20] sm:$0xff]
        %v738 = vld [vmem:[%s2 + $0x28] sm:$0xff]
        %v739 = vld [vmem:[%s2 + $0x30] sm:$0xff]
        %v740 = vld [vmem:[%s2 + $0x38] sm:$0xff]
        %v749 = vunpack.c.l.b16 %v733
        %v750 = vunpack.c.h.b16 %v733
        %v751 = vunpack.c.l.b16 %v734
        %v752 = vunpack.c.h.b16 %v734
        %v753 = vunpack.c.l.b16 %v735
        %v754 = vunpack.c.h.b16 %v735
        %v755 = vunpack.c.l.b16 %v736
        %v756 = vunpack.c.h.b16 %v736
        %v757 = vunpack.c.l.b16 %v737
        %v758 = vunpack.c.h.b16 %v737
        %v759 = vunpack.c.l.b16 %v738
        %v760 = vunpack.c.h.b16 %v738
        %v761 = vunpack.c.l.b16 %v739
        %v762 = vunpack.c.h.b16 %v739
        %v763 = vunpack.c.l.b16 %v740
        %v764 = vunpack.c.h.b16 %v740
        %v765 = vpack.c.b16 %v751, %v749
        %v766 = vpack.c.b16 %v752, %v750
        %v767 = vpack.c.b16 %v755, %v753
        %v768 = vpack.c.b16 %v756, %v754
        %v769 = vpack.c.b16 %v759, %v757
        %v770 = vpack.c.b16 %v760, %v758
        %v771 = vpack.c.b16 %v763, %v761
        %v772 = vpack.c.b16 %v764, %v762
        %v782 = vsel %vm425, %v732, 0
        %784 = vmatpush.bf16.msra.mxu0 0
        %785 = vmatpush.bf16.msra.mxu0 0
        %786 = vmatpush.bf16.msra.mxu0 0
        %787 = vmatpush.bf16.msra.mxu0 0
        %788 = vmatpush.bf16.msra.mxu0 %v771
        %789 = vmatpush.bf16.msra.mxu0 %v769
        %790 = vmatpush.bf16.msra.mxu0 %v767
        %791 = vmatpush.bf16.msra.mxu0 %v765
        %792 = vmatmul.bf16.gmra.mxu0 %v782
        %v793 = vpop.f32.mrf.mxu0
        %v794 = vadd.f32 0.0, %v793
        %v795 = vpop.f32.mrf.mxu0
        %796 = vdwg.mxu0
        %797 = vmatpush.bf16.msra.mxu0 0
        %798 = vmatpush.bf16.msra.mxu0 0
        %799 = vmatpush.bf16.msra.mxu0 0
        %800 = vmatpush.bf16.msra.mxu0 0
        %801 = vmatpush.bf16.msra.mxu0 %v772
        %802 = vmatpush.bf16.msra.mxu0 %v770
        %803 = vmatpush.bf16.msra.mxu0 %v768
        %804 = vmatpush.bf16.msra.mxu0 %v766
        %805 = vmatmul.bf16.gmra.mxu0 %v782
        %v806 = vpop.f32.mrf.mxu0
        %v807 = vadd.f32 0.0, %v806
        %v808 = vpop.f32.mrf.mxu0
        %809 = vdwg.mxu0
        %v810 = vadd.f32 %v730, %v794
        %v811 = vadd.f32 %v731, %v807
        %v812 = vxor.u32 %v810, 2147483648
        %v813 = vxor.u32 %v811, 2147483648
        %v814 = vmul.f32 %v812, 1.442695
        %v815 = vpow.pop %v814
        %v816 = vmul.f32 %v813, 1.442695
        %v817 = vpow.pop %v816
        %v818 = vadd.f32 %v815, 1.0
        %v819 = vadd.f32 %v817, 1.0
        %v820 = vrcp.pop %v818
        %v821 = vmul.f32 %v818, %v820
        %v822 = vsub.f32 1.0, %v821
        %v823 = vmul.f32 %v820, %v822
        %v824 = vadd.f32 %v820, %v823
        %vm825 = vweird.f32 %v818
        %vm826 = vweird.f32 %v820
        %vm827 = vmor %vm825, %vm826
        %v828 = vsel %vm827, %v820, %v824
        %v829 = vand.u32 2147483647, %v818
        %vm830 = vcmp.eq.f32.partialorder %v829, 8.507059e+37
        %v831 = vand.u32 %v818, 2147483648
        %v832 = vor.u32 1.1754944e-38, %v831
        %v833 = vsel %vm830, %v832, %v828
        %v834 = vmul.f32 1.0, %v833
        %v835 = vrcp.pop %v819
        %v836 = vmul.f32 %v819, %v835
        %v837 = vsub.f32 1.0, %v836
        %v838 = vmul.f32 %v835, %v837
        %v839 = vadd.f32 %v835, %v838
        %vm840 = vweird.f32 %v819
        %vm841 = vweird.f32 %v835
        %vm842 = vmor %vm840, %vm841
        %v843 = vsel %vm842, %v835, %v839
        %v844 = vand.u32 2147483647, %v819
        %vm845 = vcmp.eq.f32.partialorder %v844, 8.507059e+37
        %v846 = vand.u32 %v819, 2147483648
        %v847 = vor.u32 1.1754944e-38, %v846
        %v848 = vsel %vm845, %v847, %v843
        %v849 = vmul.f32 1.0, %v848
        %v850 = vtanh.pop %v811
        %v851 = vmul.f32 %v834, %v718
        %853 = vrot.lane.b32.xlu0 %v850, 64
        %v854 = vpop.permute.xlu0 %853
        %v856 = vmul.f32 %v834, %v854
        %858 = vrot.lane.b32.xlu0 %v856, 64
        %v859 = vpop.permute.xlu0 %858
        %v861 = vadd.f32 %v851, %v859
        %v862 = vtanh.pop %v861
        %864 = vrot.lane.b32.xlu0 %v862, 64
        %v865 = vpop.permute.xlu0 %864
        %v867 = vmul.f32 %v849, %v865
        %s868 = scalar_lea.vmem [#allocation5], 16
        %869 = vst.msk [vmem:[%s868] sm:$0xff] %vm425, %v867
        %s870 = smul.u32 3, 3
        %s871 = smul.addr %s870, 8
        %s872 = scalar_lea.vmem [#allocation4], %s871
        %v873 = vld [vmem:[%s872] sm:$0xff]
        %v874 = vld [vmem:[%s872 + $0x8] sm:$0xff]
        %v875 = vpack.c.bf16 %v867, %v867
        %v876 = vld [vmem:[%s2] sm:$0xff]
        %v877 = vld [vmem:[%s2 + $0x8] sm:$0xff]
        %v878 = vld [vmem:[%s2 + $0x10] sm:$0xff]
        %v879 = vld [vmem:[%s2 + $0x18] sm:$0xff]
        %v880 = vld [vmem:[%s2 + $0x20] sm:$0xff]
        %v881 = vld [vmem:[%s2 + $0x28] sm:$0xff]
        %v882 = vld [vmem:[%s2 + $0x30] sm:$0xff]
        %v883 = vld [vmem:[%s2 + $0x38] sm:$0xff]
        %v892 = vunpack.c.l.b16 %v876
        %v893 = vunpack.c.h.b16 %v876
        %v894 = vunpack.c.l.b16 %v877
        %v895 = vunpack.c.h.b16 %v877
        %v896 = vunpack.c.l.b16 %v878
        %v897 = vunpack.c.h.b16 %v878
        %v898 = vunpack.c.l.b16 %v879
        %v899 = vunpack.c.h.b16 %v879
        %v900 = vunpack.c.l.b16 %v880
        %v901 = vunpack.c.h.b16 %v880
        %v902 = vunpack.c.l.b16 %v881
        %v903 = vunpack.c.h.b16 %v881
        %v904 = vunpack.c.l.b16 %v882
        %v905 = vunpack.c.h.b16 %v882
        %v906 = vunpack.c.l.b16 %v883
        %v907 = vunpack.c.h.b16 %v883
        %v908 = vpack.c.b16 %v894, %v892
        %v909 = vpack.c.b16 %v895, %v893
        %v910 = vpack.c.b16 %v898, %v896
        %v911 = vpack.c.b16 %v899, %v897
        %v912 = vpack.c.b16 %v902, %v900
        %v913 = vpack.c.b16 %v903, %v901
        %v914 = vpack.c.b16 %v906, %v904
        %v915 = vpack.c.b16 %v907, %v905
        %v925 = vsel %vm425, %v875, 0
        %927 = vmatpush.bf16.msra.mxu0 0
        %928 = vmatpush.bf16.msra.mxu0 0
        %929 = vmatpush.bf16.msra.mxu0 0
        %930 = vmatpush.bf16.msra.mxu0 0
        %931 = vmatpush.bf16.msra.mxu0 %v914
        %932 = vmatpush.bf16.msra.mxu0 %v912
        %933 = vmatpush.bf16.msra.mxu0 %v910
        %934 = vmatpush.bf16.msra.mxu0 %v908
        %935 = vmatmul.bf16.gmra.mxu0 %v925
        %v936 = vpop.f32.mrf.mxu0
        %v937 = vadd.f32 0.0, %v936
        %v938 = vpop.f32.mrf.mxu0
        %939 = vdwg.mxu0
        %940 = vmatpush.bf16.msra.mxu0 0
        %941 = vmatpush.bf16.msra.mxu0 0
        %942 = vmatpush.bf16.msra.mxu0 0
        %943 = vmatpush.bf16.msra.mxu0 0
        %944 = vmatpush.bf16.msra.mxu0 %v915
        %945 = vmatpush.bf16.msra.mxu0 %v913
        %946 = vmatpush.bf16.msra.mxu0 %v911
        %947 = vmatpush.bf16.msra.mxu0 %v909
        %948 = vmatmul.bf16.gmra.mxu0 %v925
        %v949 = vpop.f32.mrf.mxu0
        %v950 = vadd.f32 0.0, %v949
        %v951 = vpop.f32.mrf.mxu0
        %952 = vdwg.mxu0
        %v953 = vadd.f32 %v873, %v937
        %v954 = vadd.f32 %v874, %v950
        %v955 = vxor.u32 %v953, 2147483648
        %v956 = vxor.u32 %v954, 2147483648
        %v957 = vmul.f32 %v955, 1.442695
        %v958 = vpow.pop %v957
        %v959 = vmul.f32 %v956, 1.442695
        %v960 = vpow.pop %v959
        %v961 = vadd.f32 %v958, 1.0
        %v962 = vadd.f32 %v960, 1.0
        %v963 = vrcp.pop %v961
        %v964 = vmul.f32 %v961, %v963
        %v965 = vsub.f32 1.0, %v964
        %v966 = vmul.f32 %v963, %v965
        %v967 = vadd.f32 %v963, %v966
        %vm968 = vweird.f32 %v961
        %vm969 = vweird.f32 %v963
        %vm970 = vmor %vm968, %vm969
        %v971 = vsel %vm970, %v963, %v967
        %v972 = vand.u32 2147483647, %v961
        %vm973 = vcmp.eq.f32.partialorder %v972, 8.507059e+37
        %v974 = vand.u32 %v961, 2147483648
        %v975 = vor.u32 1.1754944e-38, %v974
        %v976 = vsel %vm973, %v975, %v971
        %v977 = vmul.f32 1.0, %v976
        %v978 = vrcp.pop %v962
        %v979 = vmul.f32 %v962, %v978
        %v980 = vsub.f32 1.0, %v979
        %v981 = vmul.f32 %v978, %v980
        %v982 = vadd.f32 %v978, %v981
        %vm983 = vweird.f32 %v962
        %vm984 = vweird.f32 %v978
        %vm985 = vmor %vm983, %vm984
        %v986 = vsel %vm985, %v978, %v982
        %v987 = vand.u32 2147483647, %v962
        %vm988 = vcmp.eq.f32.partialorder %v987, 8.507059e+37
        %v989 = vand.u32 %v962, 2147483648
        %v990 = vor.u32 1.1754944e-38, %v989
        %v991 = vsel %vm988, %v990, %v986
        %v992 = vmul.f32 1.0, %v991
        %v993 = vtanh.pop %v954
        %v994 = vmul.f32 %v977, %v861
        %996 = vrot.lane.b32.xlu0 %v993, 64
        %v997 = vpop.permute.xlu0 %996
        %v999 = vmul.f32 %v977, %v997
        %1001 = vrot.lane.b32.xlu0 %v999, 64
        %v1002 = vpop.permute.xlu0 %1001
        %v1004 = vadd.f32 %v994, %v1002
        %v1005 = vtanh.pop %v1004
        %1007 = vrot.lane.b32.xlu0 %v1005, 64
        %v1008 = vpop.permute.xlu0 %1007
        %v1010 = vmul.f32 %v992, %v1008
        %s1011 = scalar_lea.vmem [#allocation5], 24
        %1012 = vst.msk [vmem:[%s1011] sm:$0xff] %vm425, %v1010
        %1013 = vst.msk [vmem:[#allocation2] sm:$0xff] %vm425, %v1010
        %1015 = vrot.lane.b32.xlu0 %v1004, 64
        %v1016 = vpop.permute.xlu0 %1015
        %1018 = vst.msk [vmem:[#allocation3] sm:$0xff] %vm425, %v1016
        %v1019 = vld [vmem:[#allocation5] sm:$0xff]
        %v1020 = vld [vmem:[#allocation5 + $0x8] sm:$0xff]
        %v1021 = vld [vmem:[#allocation5 + $0x10] sm:$0xff]
        %v1022 = vld [vmem:[#allocation5 + $0x18] sm:$0xff]
        %v1023 = vld [vmem:[#allocation4 + $0x10] sm:$0xff]
        %v1024 = vld [vmem:[#allocation4 + $0x28] sm:$0xff]
        %v1025 = vld [vmem:[#allocation4 + $0x40] sm:$0xff]
        %v1026 = vld [vmem:[#allocation4 + $0x58] sm:$0xff]
        %v1027 = vlaneseq
        %v1028 = vand.u32 %v1027, 127
        %vm1029 = vcmp.lt.s32.totalorder %v1028, 32
        %v1030 = vadd.f32 %v1019, %v1023
        %v1031 = vadd.f32 %v1020, %v1024
        %v1032 = vadd.f32 %v1021, %v1025
        %v1033 = vadd.f32 %v1022, %v1026
        %v1034 = vmax.f32 %v1030, 0.0
        %v1035 = vmax.f32 %v1031, 0.0
        %v1036 = vmax.f32 %v1032, 0.0
        %v1037 = vmax.f32 %v1033, 0.0
        %v1038 = vmax.f32 %v1019, 0.0
        %v1039 = vmax.f32 %v1020, 0.0
        %v1040 = vmax.f32 %v1021, 0.0
        %v1041 = vmax.f32 %v1022, 0.0
        %v1042 = vmax.f32 %v1023, 0.0
        %v1043 = vmax.f32 %v1024, 0.0
        %v1044 = vmax.f32 %v1025, 0.0
        %v1045 = vmax.f32 %v1026, 0.0
        %v1046 = vadd.f32 %v1038, %v1042
        %v1047 = vadd.f32 %v1039, %v1043
        %v1048 = vadd.f32 %v1040, %v1044
        %v1049 = vadd.f32 %v1041, %v1045
        %v1050 = vsel %vm1029, 1, 0
        %vm1051 = vcmp.eq.s32.totalorder %v1050, 1
        %v1052 = vsel %vm1051, %v1034, %v1046
        %v1053 = vsel %vm1051, %v1035, %v1047
        %v1054 = vsel %vm1051, %v1036, %v1048
        %v1055 = vsel %vm1051, %v1037, %v1049
        %v1056 = vpack.c.bf16 %v1053, %v1052
        %v1057 = vpack.c.bf16 %v1055, %v1054
        %v1058 = vld [vmem:[#allocation9] sm:$0xf]
        %v1059 = vld [vmem:[#allocation9 + $0x4] sm:$0xf]
        %v1060 = vld [vmem:[#allocation9 + $0x8] sm:$0xf]
        %v1061 = vld [vmem:[#allocation9 + $0xc] sm:$0xf]
        %v1062 = vld [vmem:[#allocation9 + $0x10] sm:$0xf]
        %v1063 = vld [vmem:[#allocation9 + $0x14] sm:$0xf]
        %v1064 = vld [vmem:[#allocation9 + $0x18] sm:$0xf]
        %v1065 = vld [vmem:[#allocation9 + $0x1c] sm:$0xf]
        %v1066 = vld [vmem:[%s5] sm:$0x1]
        %v1067 = vperm.slane %v1066, 0
        %v1076 = vunpack.c.l.b16 %v1058
        %v1077 = vunpack.c.l.b16 %v1059
        %v1078 = vunpack.c.l.b16 %v1060
        %v1079 = vunpack.c.l.b16 %v1061
        %v1080 = vunpack.c.l.b16 %v1062
        %v1081 = vunpack.c.l.b16 %v1063
        %v1082 = vunpack.c.l.b16 %v1064
        %v1083 = vunpack.c.l.b16 %v1065
        %v1084 = vpack.c.b16 %v1077, %v1076
        %v1085 = vpack.c.b16 %v1079, %v1078
        %v1086 = vpack.c.b16 %v1081, %v1080
        %v1087 = vpack.c.b16 %v1083, %v1082
        %v1093 = vsel %vm425, %v1056, 0
        %v1096 = vsel %vm425, %v1057, 0
        %1098 = vmatpush.bf16.msra.mxu0 0
        %1099 = vmatpush.bf16.msra.mxu0 0
        %1100 = vmatpush.bf16.msra.mxu0 0
        %1101 = vmatpush.bf16.msra.mxu0 0
        %1102 = vmatpush.bf16.msra.mxu0 %v1087
        %1103 = vmatpush.bf16.msra.mxu0 %v1086
        %1104 = vmatpush.bf16.msra.mxu0 %v1085
        %1105 = vmatpush.bf16.msra.mxu0 %v1084
        %1106 = vmatmul.bf16.gmra.mxu0 %v1093
        %v1107 = vpop.f32.mrf.mxu0
        %v1108 = vadd.f32 %v1067, %v1107
        %v1109 = vpop.f32.mrf.mxu0
        %v1110 = vadd.f32 %v1067, %v1109
        %1111 = vmatmul.bf16.gmra.mxu0 %v1096
        %v1112 = vpop.f32.mrf.mxu0
        %v1113 = vadd.f32 %v1067, %v1112
        %v1114 = vpop.f32.mrf.mxu0
        %v1115 = vadd.f32 %v1067, %v1114
        %1116 = vdwg.mxu0
        %v1117 = vmax.f32 %v1108, 0.0
        %v1118 = vmax.f32 %v1110, 0.0
        %v1119 = vmax.f32 %v1113, 0.0
        %v1120 = vmax.f32 %v1115, 0.0
        %v1121 = vpack.c.bf16 %v1118, %v1117
        %v1122 = vpack.c.bf16 %v1120, %v1119
        %v1123 = vld [vmem:[#allocation11] sm:$0xf]
        %v1124 = vld [vmem:[#allocation11 + $0x4] sm:$0xf]
        %v1125 = vld [vmem:[#allocation11 + $0x8] sm:$0xf]
        %v1126 = vld [vmem:[#allocation11 + $0xc] sm:$0xf]
        %v1127 = vld [vmem:[#allocation11 + $0x10] sm:$0xf]
        %v1128 = vld [vmem:[#allocation11 + $0x14] sm:$0xf]
        %v1129 = vld [vmem:[#allocation11 + $0x18] sm:$0xf]
        %v1130 = vld [vmem:[#allocation11 + $0x1c] sm:$0xf]
        %v1131 = vld [vmem:[%s5 + $0x1] sm:$0x1]
        %v1132 = vperm.slane %v1131, 0
        %v1141 = vunpack.c.l.b16 %v1123
        %v1142 = vunpack.c.l.b16 %v1124
        %v1143 = vunpack.c.l.b16 %v1125
        %v1144 = vunpack.c.l.b16 %v1126
        %v1145 = vunpack.c.l.b16 %v1127
        %v1146 = vunpack.c.l.b16 %v1128
        %v1147 = vunpack.c.l.b16 %v1129
        %v1148 = vunpack.c.l.b16 %v1130
        %v1149 = vpack.c.b16 %v1142, %v1141
        %v1150 = vpack.c.b16 %v1144, %v1143
        %v1151 = vpack.c.b16 %v1146, %v1145
        %v1152 = vpack.c.b16 %v1148, %v1147
        %v1158 = vsel %vm425, %v1121, 0
        %v1161 = vsel %vm425, %v1122, 0
        %1163 = vmatpush.bf16.msra.mxu0 0
        %1164 = vmatpush.bf16.msra.mxu0 0
        %1165 = vmatpush.bf16.msra.mxu0 0
        %1166 = vmatpush.bf16.msra.mxu0 0
        %1167 = vmatpush.bf16.msra.mxu0 %v1152
        %1168 = vmatpush.bf16.msra.mxu0 %v1151
        %1169 = vmatpush.bf16.msra.mxu0 %v1150
        %1170 = vmatpush.bf16.msra.mxu0 %v1149
        %1171 = vmatmul.bf16.gmra.mxu0 %v1158
        %v1172 = vpop.f32.mrf.mxu0
        %v1173 = vadd.f32 %v1132, %v1172
        %v1174 = vpop.f32.mrf.mxu0
        %v1175 = vadd.f32 %v1132, %v1174
        %1176 = vmatmul.bf16.gmra.mxu0 %v1161
        %v1177 = vpop.f32.mrf.mxu0
        %v1178 = vadd.f32 %v1132, %v1177
        %v1179 = vpop.f32.mrf.mxu0
        %v1180 = vadd.f32 %v1132, %v1179
        %1181 = vdwg.mxu0
        %1182 = vst [vmem:[%s295] sm:$0xff] %v1173
        %1183 = vst [vmem:[%s295 + $0x8] sm:$0xff] %v1175
        %1184 = vst [vmem:[%s295 + $0x10] sm:$0xff] %v1178
        %1185 = vst [vmem:[%s295 + $0x18] sm:$0xff] %v1180
        %s1186 = sand.u32 %s161, 1
        %s1187 = scalar_lea.sflag [#allocation8], %s1186
        %s1188 = sand.u32 %s161, 1
        %s1189 = smul.addr %s1188, 32
        %s1190 = scalar_lea.vmem [#allocation12], %s1189
        // Predicated region
        $region61: #{tpu_custom_call.1} parent=43 // pred_check
          %p1191 = pneg %p171
        $region62: #{tpu_custom_call.1} parent=43 // pred_check_branch
          %1193 = sbr.rel (%p1191) target = $region64
        $region63: #{tpu_custom_call.1} parent=43 // pred_region
          %s1194 = smul.u32 4, %s22
          %1196 = vsyncadd %s1187, 0
          %s1197 = smul.addr %s1194, 8
          %s1198 = scalar_lea.hbm %s6, %s1197
          %s1199 = sshll.u32 %s1190, 4
          %s1200 = int_to_ptr.vmem [resolvable:$true] %s1199
          %s1201 = sshll.u32 %s1198, 4
          %s1202 = int_to_ptr.hbm [resolvable:$true] %s1201
          %1207 = dma.vmem_to_hbm [thread:$0]  %s1200, 512, %s1202, %s1187, 128, 128, 8
        $region64: #{tpu_custom_call.1} parent=43 // pred_fallthru
          _
      $region44: #{tpu_custom_call.1} parent=5 // pred_fallthru
        _
      %p1208 = scmp.le.s32.totalorder 2, %s17
      // Predicated region
      $region65: #{tpu_custom_call.1} parent=5 // pred_check
        %p1209 = pneg %p1208
      $region66: #{tpu_custom_call.1} parent=5 // pred_check_branch
        %1211 = sbr.rel (%p1209) target = $region68
      $region67: #{tpu_custom_call.1} parent=5 // pred_region
        %s1212 = ssub.s32 %s17, 2
        // Predicated region
        $region69: #{tpu_custom_call.1} parent=67 // pred_check
          %p1213 = pneg %p177
        $region70: #{tpu_custom_call.1} parent=67 // pred_check_branch
          %1215 = sbr.rel (%p1213) target = $region72
        $region71: #{tpu_custom_call.1} parent=67 // pred_region
          %s1216 = sand.u32 %s162, 1
          %s1217 = scalar_lea.sflag [#allocation8], %s1216
          %s1218 = sand.u32 %s162, 1
          %s1219 = smul.addr %s1218, 32
          %s1220 = scalar_lea.vmem [#allocation12], %s1219
          %1222 = dma.done %s1217, 512
        $region72: #{tpu_custom_call.1} parent=67 // pred_fallthru
          _
      $region68: #{tpu_custom_call.1} parent=5 // pred_fallthru
        _
    $region6: #{tpu_custom_call.1} parent=1 // loop_footer
      %s21 = sadd.s32 1, %s17
    $region7: #{tpu_custom_call.1} parent=1 // loop_footer_branch
      %16 = sbr.rel target = $region3
    $region8: #{tpu_custom_call.1} parent=1 // loop_exit
      _
    %1223 = vsyncpa [#allocation7], 1
    %s1224 = scalar_lea.sflag [#allocation7], 1
    %1225 = vsyncpa %s1224, 1
    %1226 = vsyncpa [#allocation10], 1
    %1227 = vsyncpa [#allocation8], 1
    %s1228 = scalar_lea.sflag [#allocation8], 1
    %1229 = vsyncpa %s1228, 1

</llo_original>
